<compile_context>
chip_gen: v7x
topology: tpu7x:2x2x1
jax: 0.10.0
libtpu: 0.0.40
codegen_flags: <defaults>
</compile_context>

<pallas_src>
import functools
import math

import jax
import jax.numpy as jnp
import numpy as np
from jax.experimental import pallas as pl
from jax.experimental.pallas import tpu as pltpu


def _round_up(x, m):
    return ((x + m - 1) // m) * m


# ---------------------------------------------------------------------------
# Pallas kernels
# ---------------------------------------------------------------------------
def _encoder_stack_kernel(nhead,
                          x_ref, mask_ref,
                          wi_ref, bi_ref, wo_ref, bo_ref,
                          ln1w_ref, ln1b_ref, ln2w_ref, ln2b_ref,
                          w1_ref, b1_ref, w2_ref, b2_ref,
                          o_ref, ctx_ref):
    """Fused stack of nn.TransformerEncoderLayer (post-norm, ReLU, eps=1e-5).

    grid = (batch, layer).  Per grid step:
      x_ref / o_ref : (1, S, E)  -- o_ref stays VMEM-resident across the layer axis
      mask_ref      : (S, S)     -- additive causal mask
      weights       : (1, ...)   -- layer-l slice of the stacked parameters,
                                    matmul weights in (in, out) layout, bf16
      ctx_ref       : (S, E) f32 VMEM scratch (per-head context slab)
    """
    _, S, E = x_ref.shape
    d = E // nhead
    scale = 1.0 / math.sqrt(d)
    eps = 1e-5

    # Layer 0: pull the input activation into the resident output block.
    @pl.when(pl.program_id(1) == 0)
    def _():
        o_ref[...] = x_ref[...]

    def matmul(a, w):
        # a: (rows, in) bf16, w: (in, out) bf16 -> (rows, out) f32 (MXU, f32 accum).
        return jnp.dot(a, w, preferred_element_type=jnp.float32)

    def layernorm(v, w, b):
        mu = jnp.mean(v, axis=-1, keepdims=True)
        var = jnp.mean((v - mu) ** 2, axis=-1, keepdims=True)
        return (v - mu) * jax.lax.rsqrt(var + eps) * w + b

    xb = o_ref[0]                                   # (S, E) f32, resident activation
    mask = mask_ref[...]                            # (S, S)

    # --- self-attention -----------------------------------------------------
    # Fused q/k/v projection: one (S, E) x (E, 3E) MXU matmul.
    qkv = matmul(xb.astype(jnp.bfloat16), wi_ref[0]) + bi_ref[0]     # (S, 3E) f32
    q, k, v = qkv[:, :E], qkv[:, E:2 * E], qkv[:, 2 * E:]

    # Per-head scores/context (nhead is a small static constant); each head's
    # context goes straight into the scratch slab at its lane offset (no concat).
    for h in range(nhead):
        lo = h * d
        qh = q[:, lo:lo + d].astype(jnp.bfloat16)
        kh = k[:, lo:lo + d].astype(jnp.bfloat16)
        vh = v[:, lo:lo + d].astype(jnp.bfloat16)
        sc = jax.lax.dot_general(qh, kh, (((1,), (1,)), ((), ())),
                                 preferred_element_type=jnp.float32) * scale + mask
        sc = sc - jnp.max(sc, axis=-1, keepdims=True)
        p = jnp.exp(sc)
        p = p * pl.reciprocal(jnp.sum(p, axis=-1, keepdims=True), approx=True)
        ctx_ref[:, lo:lo + d] = jnp.dot(p.astype(jnp.bfloat16), vh,
                                        preferred_element_type=jnp.float32)

    attn = matmul(ctx_ref[...].astype(jnp.bfloat16), wo_ref[0]) + bo_ref[0]
    y = layernorm(xb + attn, ln1w_ref[0], ln1b_ref[0])

    # --- feed-forward --------------------------------------------------------
    h1 = jnp.maximum(matmul(y.astype(jnp.bfloat16), w1_ref[0]) + b1_ref[0], 0.0)
    h2 = matmul(h1.astype(jnp.bfloat16), w2_ref[0]) + b2_ref[0]
    o_ref[0] = layernorm(y + h2, ln2w_ref[0], ln2b_ref[0])


def _decoder_kernel(x_ref, w_ref, b_ref, o_ref):
    """One (row-tile, vocab-tile) block of logits = x @ w + b (lane-dense out)."""
    x = x_ref[0].astype(jnp.bfloat16)               # (ts, E)
    o_ref[...] = jnp.dot(x, w_ref[...],
                         preferred_element_type=jnp.float32) + b_ref[...]


# ---------------------------------------------------------------------------
# Pallas wrappers
# ---------------------------------------------------------------------------
def encoder_stack(x, mask, params, nhead):
    """x: (N, S, E) f32 batch-first -> (N, S, E) f32 after all encoder layers."""
    N, S, E = x.shape
    L = params['wi'].shape[0]

    weights = (params['wi'], params['bi'], params['wo'], params['bo'],
               params['ln1w'], params['ln1b'], params['ln2w'], params['ln2b'],
               params['w1'], params['b1'], params['w2'], params['b2'])

    return pl.pallas_call(
        functools.partial(_encoder_stack_kernel, nhead),
        out_shape=jax.ShapeDtypeStruct((N, S, E), jnp.float32),
        grid_spec=pltpu.PrefetchScalarGridSpec(
            num_scalar_prefetch=0,
            grid=(N, L),
            in_specs=[pl.BlockSpec((1, S, E), lambda n, l: (n, 0, 0)),
                      pl.BlockSpec((S, S), lambda n, l: (0, 0))]
                     + [pl.BlockSpec((1,) + w.shape[1:], lambda n, l: (l, 0, 0))
                        for w in weights],
            out_specs=pl.BlockSpec((1, S, E), lambda n, l: (n, 0, 0)),
            scratch_shapes=[pltpu.VMEM((S, E), jnp.float32)],
        ),
        compiler_params=pltpu.CompilerParams(
            dimension_semantics=("parallel", "arbitrary")),
    )(x, mask, *weights)


def decoder_linear(h, w_pad, b_pad, ntoken):
    """h: (N, S, E) -> logits (S, N, ntoken). Vocab is padded to a multiple of 128
    so every output store is lane-dense; the pad is sliced off after a free reshape."""
    N, S, E = h.shape
    Vpad = w_pad.shape[1]
    ts = S                                                  # row tile (full S here)
    tv = max(t for t in (512, 256, 128) if Vpad % t == 0)   # lane-dense vocab tile
    vb = Vpad // tv

    out = pl.pallas_call(
        _decoder_kernel,
        out_shape=jax.ShapeDtypeStruct((S, N * Vpad), jnp.float32),
        grid_spec=pltpu.PrefetchScalarGridSpec(
            num_scalar_prefetch=0,
            grid=(N, S // ts, vb),
            in_specs=[pl.BlockSpec((1, ts, E), lambda n, i, j: (n, i, 0)),
                      pl.BlockSpec((E, tv), lambda n, i, j: (0, j)),
                      pl.BlockSpec((1, tv), lambda n, i, j: (0, j))],
            out_specs=pl.BlockSpec((ts, tv), lambda n, i, j: (i, n * vb + j)),
        ),
        compiler_params=pltpu.CompilerParams(
            dimension_semantics=("parallel", "parallel", "parallel")),
    )(h, w_pad, b_pad)
    return out.reshape(S, N, Vpad)[:, :, :ntoken]           # seq-first, no transpose


# ---------------------------------------------------------------------------
# Model glue (params, pos-encoding, mask, embedding lookup)
# ---------------------------------------------------------------------------
def positional_encoding_table(max_pos, d_model):
    pos = jnp.arange(max_pos, dtype=jnp.float32)[:, None]
    i = jnp.arange(d_model)[None, :]
    angle_rates = 1.0 / jnp.power(
        10000.0, (2 * (i // 2)).astype(jnp.float32) / float(d_model))
    angle_rads = pos * angle_rates
    pe = jnp.zeros((max_pos, d_model), jnp.float32)
    pe = pe.at[:, 0::2].set(jnp.sin(angle_rads[:, 0::2]))
    pe = pe.at[:, 1::2].set(jnp.cos(angle_rads[:, 1::2]))
    return pe


def causal_mask(S):
    tril = jnp.tril(jnp.ones((S, S), jnp.float32))
    return jnp.where(tril == 1.0, 0.0, -jnp.inf).astype(jnp.float32)


def init_params(key, ntoken, ninp, nhead, nhid, nlayers):
    E, Hf, L = ninp, nhid, nlayers
    ks = jax.random.split(key, 8)
    u = lambda k, shape: jax.random.uniform(k, shape, jnp.float32, -0.1, 0.1)

    vpad = _round_up(ntoken, 128)
    # Decoder weight drawn in nn.Linear (out, in) layout, stored transposed as
    # (E, Vpad) so the Pallas decoder matmul is a plain A @ B with a lane-dense
    # output tile; the padded vocab columns are zero.
    dec_w = jnp.zeros((E, vpad), jnp.float32).at[:, :ntoken].set(
        u(ks[1], (ntoken, E)).T)

    return {
        'emb': u(ks[0], (ntoken, E)),
        'pe': positional_encoding_table(5000, E),
        'dec_w': dec_w.astype(jnp.bfloat16),            # (E, Vpad)
        'dec_b': jnp.zeros((1, vpad), jnp.float32),     # PyTorch zero-inits dec bias
        # Stacked per-layer encoder parameters (leading dim = layer index).
        # Matmul weights pre-transposed to (in, out) and stored bf16 (MXU
        # operands); biases / LN params in f32.
        'wi': u(ks[2], (L, 3 * E, E)).swapaxes(-1, -2).astype(jnp.bfloat16),  # (L,E,3E)
        'bi': jnp.zeros((L, 1, 3 * E), jnp.float32),
        'wo': u(ks[3], (L, E, E)).swapaxes(-1, -2).astype(jnp.bfloat16),      # (L,E,E)
        'bo': jnp.zeros((L, 1, E), jnp.float32),
        'ln1w': jnp.ones((L, 1, E), jnp.float32),
        'ln1b': jnp.zeros((L, 1, E), jnp.float32),
        'ln2w': jnp.ones((L, 1, E), jnp.float32),
        'ln2b': jnp.zeros((L, 1, E), jnp.float32),
        'w1': u(ks[4], (L, Hf, E)).swapaxes(-1, -2).astype(jnp.bfloat16),     # (L,E,Hf)
        'b1': u(ks[5], (L, 1, Hf)),
        'w2': u(ks[6], (L, E, Hf)).swapaxes(-1, -2).astype(jnp.bfloat16),     # (L,Hf,E)
        'b2': u(ks[7], (L, 1, E)),
    }


def transformer_forward(src, params, nhead):
    """src: (S, N) int32 token ids -> (S, N, ntoken) float32 logits."""
    S, N = src.shape
    ntoken, E = params['emb'].shape
    # TODO(synk): embedding gather + positional-encoding add left to XLA (glue).
    # Gather directly into batch-first (N, S, E) so no activation transpose exists.
    x = params['emb'][src.T] * math.sqrt(E)                 # (N, S, E)
    # PositionalEncoding quirk reproduced from PyTorch: the table is sliced by
    # inputs.shape[1] (the *batch* dim of the seq-first input) and broadcast
    # over the sequence axis.
    x = x + params['pe'][:N][:, None, :]
    mask = causal_mask(S)
    h = encoder_stack(x, mask, params, nhead)               # fused Pallas kernel
    return decoder_linear(h, params['dec_w'], params['dec_b'], ntoken)


# ---------------------------------------------------------------------------
# Pure-JAX reference: same math as the PyTorch module; matmul operands are cast
# to bf16 (matching the kernel's MXU input precision) with f32 accumulation.
# ---------------------------------------------------------------------------
def reference_forward(src, params, nhead):
    S, N = src.shape
    ntoken, E = params['emb'].shape
    d = E // nhead
    eps = 1e-5
    bf = lambda a: a.astype(jnp.bfloat16)

    def lin(x, w, b):   # w stored (in, out): x @ w + b
        return jnp.einsum('...i,io->...o', bf(x), bf(w),
                          preferred_element_type=jnp.float32) + b

    def layernorm(x, w, b):
        mu = jnp.mean(x, -1, keepdims=True)
        var = jnp.mean((x - mu) ** 2, -1, keepdims=True)
        return (x - mu) / jnp.sqrt(var + eps) * w + b

    x = params['emb'][src] * math.sqrt(E)                   # (S, N, E) seq-first
    x = x + params['pe'][:N][None, :, :]
    mask = causal_mask(S)

    for l in range(params['wi'].shape[0]):
        wi, bi = params['wi'][l], params['bi'][l, 0]        # wi: (E, 3E)
        q = lin(x, wi[:, :E], bi[:E])
        k = lin(x, wi[:, E:2 * E], bi[E:2 * E])
        v = lin(x, wi[:, 2 * E:], bi[2 * E:])
        qh = q.reshape(S, N, nhead, d)
        kh = k.reshape(S, N, nhead, d)
        vh = v.reshape(S, N, nhead, d)
        sc = jnp.einsum('qnhd,knhd->nhqk', bf(qh), bf(kh),
                        preferred_element_type=jnp.float32) / math.sqrt(d) + mask
        p = jax.nn.softmax(sc, axis=-1)
        a = jnp.einsum('nhqk,knhd->qnhd', bf(p), bf(vh),
                       preferred_element_type=jnp.float32).reshape(S, N, E)
        a = lin(a, params['wo'][l], params['bo'][l, 0])
        x = layernorm(x + a, params['ln1w'][l, 0], params['ln1b'][l, 0])
        h1 = jax.nn.relu(lin(x, params['w1'][l], params['b1'][l, 0]))
        h2 = lin(h1, params['w2'][l], params['b2'][l, 0])
        x = layernorm(x + h2, params['ln2w'][l, 0], params['ln2b'][l, 0])

    return lin(x, params['dec_w'][:, :ntoken], params['dec_b'][0, :ntoken])


# ---------------------------------------------------------------------------
if __name__ == "__main__":
    ntoken, ninp, nhead, nhid, nlayers = 64, 32, 4, 64, 2
    S, N = 8, 2   # sequence length, batch

    key = jax.random.PRNGKey(0)
    kp, ks = jax.random.split(key)
    params = init_params(kp, ntoken, ninp, nhead, nhid, nlayers)
    src = jax.random.randint(ks, (S, N), 0, ntoken, dtype=jnp.int32)

    out = jax.block_until_ready(transformer_forward(src, params, nhead))
    assert out.shape == (S, N, ntoken)

    ref = jax.block_until_ready(reference_forward(src, params, nhead))
    np.testing.assert_allclose(np.asarray(out), np.asarray(ref),
                               rtol=2e-2, atol=2e-2)

    print("KERNEL_OK")
</pallas_src>

<mosaic_0001>
module attributes {stable_mosaic.version = 11 : i64} {
  func.func @_encoder_stack_kernel(%arg0: i32, %arg1: i32, %arg2: memref<1x8x32xf32, #tpu.memory_space<vmem>>, %arg3: memref<8x8xf32, #tpu.memory_space<vmem>>, %arg4: memref<1x32x96xbf16, #tpu.memory_space<vmem>>, %arg5: memref<1x1x96xf32, #tpu.memory_space<vmem>>, %arg6: memref<1x32x32xbf16, #tpu.memory_space<vmem>>, %arg7: memref<1x1x32xf32, #tpu.memory_space<vmem>>, %arg8: memref<1x1x32xf32, #tpu.memory_space<vmem>>, %arg9: memref<1x1x32xf32, #tpu.memory_space<vmem>>, %arg10: memref<1x1x32xf32, #tpu.memory_space<vmem>>, %arg11: memref<1x1x32xf32, #tpu.memory_space<vmem>>, %arg12: memref<1x32x64xbf16, #tpu.memory_space<vmem>>, %arg13: memref<1x1x64xf32, #tpu.memory_space<vmem>>, %arg14: memref<1x64x32xbf16, #tpu.memory_space<vmem>>, %arg15: memref<1x1x32xf32, #tpu.memory_space<vmem>>, %arg16: memref<1x8x32xf32, #tpu.memory_space<vmem>>, %arg17: memref<8x32xf32, #tpu.memory_space<vmem>>) attributes {dimension_semantics = [#tpu.dimension_semantics<parallel>, #tpu.dimension_semantics<arbitrary>], iteration_bounds = array<i64: 2, 2>, scalar_prefetch = 0 : i64, scratch_operands = 1 : i64, tpu.core_type = #tpu.core_type<tc>, window_params = [{transform_indices = @transform_0, window_bounds = array<i64: 1, 8, 32>}, {pipeline_mode = #tpu.pipeline_mode<synchronous>, transform_indices = @transform_1, window_bounds = array<i64: 8, 8>}, {transform_indices = @transform_2, window_bounds = array<i64: 1, 32, 96>}, {transform_indices = @transform_3, window_bounds = array<i64: 1, 1, 96>}, {transform_indices = @transform_4, window_bounds = array<i64: 1, 32, 32>}, {transform_indices = @transform_5, window_bounds = array<i64: 1, 1, 32>}, {transform_indices = @transform_6, window_bounds = array<i64: 1, 1, 32>}, {transform_indices = @transform_7, window_bounds = array<i64: 1, 1, 32>}, {transform_indices = @transform_8, window_bounds = array<i64: 1, 1, 32>}, {transform_indices = @transform_9, window_bounds = array<i64: 1, 1, 32>}, {transform_indices = @transform_10, window_bounds = array<i64: 1, 32, 64>}, {transform_indices = @transform_11, window_bounds = array<i64: 1, 1, 64>}, {transform_indices = @transform_12, window_bounds = array<i64: 1, 64, 32>}, {transform_indices = @transform_13, window_bounds = array<i64: 1, 1, 32>}, {transform_indices = @transform_14, window_bounds = array<i64: 1, 8, 32>}]} {
    %c0_i32 = arith.constant 0 : i32
    %0 = arith.cmpi eq, %arg1, %c0_i32 : i32
    %1 = arith.extui %0 : i1 to i32
    %c0_i32_0 = arith.constant 0 : i32
    %2 = arith.cmpi ne, %1, %c0_i32_0 : i32
    scf.if %2 {
      %c0_85 = arith.constant 0 : index
      %c0_86 = arith.constant 0 : index
      %c0_87 = arith.constant 0 : index
      %193 = vector.load %arg2[%c0_85, %c0_86, %c0_87] : memref<1x8x32xf32, #tpu.memory_space<vmem>>, vector<1x8x32xf32>
      %c0_88 = arith.constant 0 : index
      %c0_89 = arith.constant 0 : index
      %c0_90 = arith.constant 0 : index
      %194 = vector.load %arg16[%c0_88, %c0_89, %c0_90] : memref<1x8x32xf32, #tpu.memory_space<vmem>>, vector<1x8x32xf32>
      tpu.vector_store %arg16[%c0_88, %c0_89, %c0_90], %193 {strides = array<i32>} : memref<1x8x32xf32, #tpu.memory_space<vmem>>, vector<1x8x32xf32>,
    } else {
    }
    %c0 = arith.constant 0 : index
    %c0_1 = arith.constant 0 : index
    %c0_2 = arith.constant 0 : index
    %3 = vector.load %arg16[%c0, %c0_1, %c0_2] : memref<1x8x32xf32, #tpu.memory_space<vmem>>, vector<1x8x32xf32>
    %4 = vector.shape_cast %3 : vector<1x8x32xf32> to vector<8x32xf32>
    %c0_3 = arith.constant 0 : index
    %c0_4 = arith.constant 0 : index
    %5 = vector.load %arg3[%c0_3, %c0_4] : memref<8x8xf32, #tpu.memory_space<vmem>>, vector<8x8xf32>
    %6 = arith.truncf %4 : vector<8x32xf32> to vector<8x32xbf16>
    %c0_5 = arith.constant 0 : index
    %c0_6 = arith.constant 0 : index
    %c0_7 = arith.constant 0 : index
    %7 = vector.load %arg4[%c0_5, %c0_6, %c0_7] : memref<1x32x96xbf16, #tpu.memory_space<vmem>>, vector<1x32x96xbf16>
    %8 = vector.shape_cast %7 : vector<1x32x96xbf16> to vector<32x96xbf16>
    %cst = arith.constant dense<0.000000e+00> : vector<8x96xf32>
    %9 = tpu.matmul %6, %8, %cst {dimension_numbers = #tpu.dot_dimension_numbers<[1], [0], [0], [1], [0, 0, 1, 1], [], []>} : vector<8x32xbf16>, vector<32x96xbf16>, vector<8x96xf32> -> vector<8x96xf32>
    %c0_8 = arith.constant 0 : index
    %c0_9 = arith.constant 0 : index
    %c0_10 = arith.constant 0 : index
    %10 = vector.load %arg5[%c0_8, %c0_9, %c0_10] : memref<1x1x96xf32, #tpu.memory_space<vmem>>, vector<1x1x96xf32>
    %11 = vector.shape_cast %10 : vector<1x1x96xf32> to vector<1x96xf32>
    %12 = vector.broadcast %11 : vector<1x96xf32> to vector<8x96xf32>
    %13 = arith.addf %9, %12 : vector<8x96xf32>
    %14 = vector.extract_strided_slice %13 {offsets = [0, 0], sizes = [8, 32], strides = [1, 1]} : vector<8x96xf32> to vector<8x32xf32>
    %15 = vector.extract_strided_slice %13 {offsets = [0, 32], sizes = [8, 32], strides = [1, 1]} : vector<8x96xf32> to vector<8x32xf32>
    %16 = vector.extract_strided_slice %13 {offsets = [0, 64], sizes = [8, 32], strides = [1, 1]} : vector<8x96xf32> to vector<8x32xf32>
    %17 = vector.extract_strided_slice %14 {offsets = [0, 0], sizes = [8, 8], strides = [1, 1]} : vector<8x32xf32> to vector<8x8xf32>
    %18 = arith.truncf %17 : vector<8x8xf32> to vector<8x8xbf16>
    %19 = vector.extract_strided_slice %15 {offsets = [0, 0], sizes = [8, 8], strides = [1, 1]} : vector<8x32xf32> to vector<8x8xf32>
    %20 = arith.truncf %19 : vector<8x8xf32> to vector<8x8xbf16>
    %21 = vector.extract_strided_slice %16 {offsets = [0, 0], sizes = [8, 8], strides = [1, 1]} : vector<8x32xf32> to vector<8x8xf32>
    %22 = arith.truncf %21 : vector<8x8xf32> to vector<8x8xbf16>
    %cst_11 = arith.constant dense<0.000000e+00> : vector<8x8xf32>
    %23 = tpu.matmul %18, %20, %cst_11 {dimension_numbers = #tpu.dot_dimension_numbers<[1], [1], [0], [0], [0, 0, 1, 0], [], []>} : vector<8x8xbf16>, vector<8x8xbf16>, vector<8x8xf32> -> vector<8x8xf32>
    %cst_12 = arith.constant 0.353553385 : f32
    %24 = vector.broadcast %cst_12 : f32 to vector<8x8xf32>
    %25 = arith.mulf %23, %24 : vector<8x8xf32>
    %26 = arith.addf %25, %5 : vector<8x8xf32>
    %cst_13 = arith.constant dense<0xFF800000> : vector<8xf32>
    %27 = vector.multi_reduction <maximumf>, %26, %cst_13 [1] : vector<8x8xf32> to vector<8xf32>
    %28 = vector.shape_cast %27 : vector<8xf32> to vector<8x1xf32>
    %29 = vector.broadcast %28 : vector<8x1xf32> to vector<8x8xf32>
    %30 = arith.subf %26, %29 : vector<8x8xf32>
    %31 = math.exp %30 : vector<8x8xf32>
    %cst_14 = arith.constant dense<0.000000e+00> : vector<8xf32>
    %32 = vector.multi_reduction <add>, %31, %cst_14 [1] : vector<8x8xf32> to vector<8xf32>
    %33 = vector.shape_cast %32 : vector<8xf32> to vector<8x1xf32>
    %34 = tpu.reciprocal %33 {approx = true} : vector<8x1xf32> -> vector<8x1xf32>
    %35 = vector.broadcast %34 : vector<8x1xf32> to vector<8x8xf32>
    %36 = arith.mulf %31, %35 : vector<8x8xf32>
    %37 = arith.truncf %36 : vector<8x8xf32> to vector<8x8xbf16>
    %cst_15 = arith.constant dense<0.000000e+00> : vector<8x8xf32>
    %38 = tpu.matmul %37, %22, %cst_15 {dimension_numbers = #tpu.dot_dimension_numbers<[1], [0], [0], [1], [0, 0, 1, 1], [], []>} : vector<8x8xbf16>, vector<8x8xbf16>, vector<8x8xf32> -> vector<8x8xf32>
    %c0_16 = arith.constant 0 : index
    %c0_17 = arith.constant 0 : index
    %39 = vector.load %arg17[%c0_16, %c0_17] : memref<8x32xf32, #tpu.memory_space<vmem>>, vector<8x8xf32>
    tpu.vector_store %arg17[%c0_16, %c0_17], %38 {strides = array<i32>} : memref<8x32xf32, #tpu.memory_space<vmem>>, vector<8x8xf32>,
    %40 = vector.extract_strided_slice %14 {offsets = [0, 8], sizes = [8, 8], strides = [1, 1]} : vector<8x32xf32> to vector<8x8xf32>
    %41 = arith.truncf %40 : vector<8x8xf32> to vector<8x8xbf16>
    %42 = vector.extract_strided_slice %15 {offsets = [0, 8], sizes = [8, 8], strides = [1, 1]} : vector<8x32xf32> to vector<8x8xf32>
    %43 = arith.truncf %42 : vector<8x8xf32> to vector<8x8xbf16>
    %44 = vector.extract_strided_slice %16 {offsets = [0, 8], sizes = [8, 8], strides = [1, 1]} : vector<8x32xf32> to vector<8x8xf32>
    %45 = arith.truncf %44 : vector<8x8xf32> to vector<8x8xbf16>
    %cst_18 = arith.constant dense<0.000000e+00> : vector<8x8xf32>
    %46 = tpu.matmul %41, %43, %cst_18 {dimension_numbers = #tpu.dot_dimension_numbers<[1], [1], [0], [0], [0, 0, 1, 0], [], []>} : vector<8x8xbf16>, vector<8x8xbf16>, vector<8x8xf32> -> vector<8x8xf32>
    %cst_19 = arith.constant 0.353553385 : f32
    %47 = vector.broadcast %cst_19 : f32 to vector<8x8xf32>
    %48 = arith.mulf %46, %47 : vector<8x8xf32>
    %49 = arith.addf %48, %5 : vector<8x8xf32>
    %cst_20 = arith.constant dense<0xFF800000> : vector<8xf32>
    %50 = vector.multi_reduction <maximumf>, %49, %cst_20 [1] : vector<8x8xf32> to vector<8xf32>
    %51 = vector.shape_cast %50 : vector<8xf32> to vector<8x1xf32>
    %52 = vector.broadcast %51 : vector<8x1xf32> to vector<8x8xf32>
    %53 = arith.subf %49, %52 : vector<8x8xf32>
    %54 = math.exp %53 : vector<8x8xf32>
    %cst_21 = arith.constant dense<0.000000e+00> : vector<8xf32>
    %55 = vector.multi_reduction <add>, %54, %cst_21 [1] : vector<8x8xf32> to vector<8xf32>
    %56 = vector.shape_cast %55 : vector<8xf32> to vector<8x1xf32>
    %57 = tpu.reciprocal %56 {approx = true} : vector<8x1xf32> -> vector<8x1xf32>
    %58 = vector.broadcast %57 : vector<8x1xf32> to vector<8x8xf32>
    %59 = arith.mulf %54, %58 : vector<8x8xf32>
    %60 = arith.truncf %59 : vector<8x8xf32> to vector<8x8xbf16>
    %cst_22 = arith.constant dense<0.000000e+00> : vector<8x8xf32>
    %61 = tpu.matmul %60, %45, %cst_22 {dimension_numbers = #tpu.dot_dimension_numbers<[1], [0], [0], [1], [0, 0, 1, 1], [], []>} : vector<8x8xbf16>, vector<8x8xbf16>, vector<8x8xf32> -> vector<8x8xf32>
    %c0_23 = arith.constant 0 : index
    %c8 = arith.constant 8 : index
    %62 = vector.load %arg17[%c0_23, %c8] : memref<8x32xf32, #tpu.memory_space<vmem>>, vector<8x8xf32>
    tpu.vector_store %arg17[%c0_23, %c8], %61 {strides = array<i32>} : memref<8x32xf32, #tpu.memory_space<vmem>>, vector<8x8xf32>,
    %63 = vector.extract_strided_slice %14 {offsets = [0, 16], sizes = [8, 8], strides = [1, 1]} : vector<8x32xf32> to vector<8x8xf32>
    %64 = arith.truncf %63 : vector<8x8xf32> to vector<8x8xbf16>
    %65 = vector.extract_strided_slice %15 {offsets = [0, 16], sizes = [8, 8], strides = [1, 1]} : vector<8x32xf32> to vector<8x8xf32>
    %66 = arith.truncf %65 : vector<8x8xf32> to vector<8x8xbf16>
    %67 = vector.extract_strided_slice %16 {offsets = [0, 16], sizes = [8, 8], strides = [1, 1]} : vector<8x32xf32> to vector<8x8xf32>
    %68 = arith.truncf %67 : vector<8x8xf32> to vector<8x8xbf16>
    %cst_24 = arith.constant dense<0.000000e+00> : vector<8x8xf32>
    %69 = tpu.matmul %64, %66, %cst_24 {dimension_numbers = #tpu.dot_dimension_numbers<[1], [1], [0], [0], [0, 0, 1, 0], [], []>} : vector<8x8xbf16>, vector<8x8xbf16>, vector<8x8xf32> -> vector<8x8xf32>
    %cst_25 = arith.constant 0.353553385 : f32
    %70 = vector.broadcast %cst_25 : f32 to vector<8x8xf32>
    %71 = arith.mulf %69, %70 : vector<8x8xf32>
    %72 = arith.addf %71, %5 : vector<8x8xf32>
    %cst_26 = arith.constant dense<0xFF800000> : vector<8xf32>
    %73 = vector.multi_reduction <maximumf>, %72, %cst_26 [1] : vector<8x8xf32> to vector<8xf32>
    %74 = vector.shape_cast %73 : vector<8xf32> to vector<8x1xf32>
    %75 = vector.broadcast %74 : vector<8x1xf32> to vector<8x8xf32>
    %76 = arith.subf %72, %75 : vector<8x8xf32>
    %77 = math.exp %76 : vector<8x8xf32>
    %cst_27 = arith.constant dense<0.000000e+00> : vector<8xf32>
    %78 = vector.multi_reduction <add>, %77, %cst_27 [1] : vector<8x8xf32> to vector<8xf32>
    %79 = vector.shape_cast %78 : vector<8xf32> to vector<8x1xf32>
    %80 = tpu.reciprocal %79 {approx = true} : vector<8x1xf32> -> vector<8x1xf32>
    %81 = vector.broadcast %80 : vector<8x1xf32> to vector<8x8xf32>
    %82 = arith.mulf %77, %81 : vector<8x8xf32>
    %83 = arith.truncf %82 : vector<8x8xf32> to vector<8x8xbf16>
    %cst_28 = arith.constant dense<0.000000e+00> : vector<8x8xf32>
    %84 = tpu.matmul %83, %68, %cst_28 {dimension_numbers = #tpu.dot_dimension_numbers<[1], [0], [0], [1], [0, 0, 1, 1], [], []>} : vector<8x8xbf16>, vector<8x8xbf16>, vector<8x8xf32> -> vector<8x8xf32>
    %c0_29 = arith.constant 0 : index
    %c16 = arith.constant 16 : index
    %85 = vector.load %arg17[%c0_29, %c16] : memref<8x32xf32, #tpu.memory_space<vmem>>, vector<8x8xf32>
    tpu.vector_store %arg17[%c0_29, %c16], %84 {strides = array<i32>} : memref<8x32xf32, #tpu.memory_space<vmem>>, vector<8x8xf32>,
    %86 = vector.extract_strided_slice %14 {offsets = [0, 24], sizes = [8, 8], strides = [1, 1]} : vector<8x32xf32> to vector<8x8xf32>
    %87 = arith.truncf %86 : vector<8x8xf32> to vector<8x8xbf16>
    %88 = vector.extract_strided_slice %15 {offsets = [0, 24], sizes = [8, 8], strides = [1, 1]} : vector<8x32xf32> to vector<8x8xf32>
    %89 = arith.truncf %88 : vector<8x8xf32> to vector<8x8xbf16>
    %90 = vector.extract_strided_slice %16 {offsets = [0, 24], sizes = [8, 8], strides = [1, 1]} : vector<8x32xf32> to vector<8x8xf32>
    %91 = arith.truncf %90 : vector<8x8xf32> to vector<8x8xbf16>
    %cst_30 = arith.constant dense<0.000000e+00> : vector<8x8xf32>
    %92 = tpu.matmul %87, %89, %cst_30 {dimension_numbers = #tpu.dot_dimension_numbers<[1], [1], [0], [0], [0, 0, 1, 0], [], []>} : vector<8x8xbf16>, vector<8x8xbf16>, vector<8x8xf32> -> vector<8x8xf32>
    %cst_31 = arith.constant 0.353553385 : f32
    %93 = vector.broadcast %cst_31 : f32 to vector<8x8xf32>
    %94 = arith.mulf %92, %93 : vector<8x8xf32>
    %95 = arith.addf %94, %5 : vector<8x8xf32>
    %cst_32 = arith.constant dense<0xFF800000> : vector<8xf32>
    %96 = vector.multi_reduction <maximumf>, %95, %cst_32 [1] : vector<8x8xf32> to vector<8xf32>
    %97 = vector.shape_cast %96 : vector<8xf32> to vector<8x1xf32>
    %98 = vector.broadcast %97 : vector<8x1xf32> to vector<8x8xf32>
    %99 = arith.subf %95, %98 : vector<8x8xf32>
    %100 = math.exp %99 : vector<8x8xf32>
    %cst_33 = arith.constant dense<0.000000e+00> : vector<8xf32>
    %101 = vector.multi_reduction <add>, %100, %cst_33 [1] : vector<8x8xf32> to vector<8xf32>
    %102 = vector.shape_cast %101 : vector<8xf32> to vector<8x1xf32>
    %103 = tpu.reciprocal %102 {approx = true} : vector<8x1xf32> -> vector<8x1xf32>
    %104 = vector.broadcast %103 : vector<8x1xf32> to vector<8x8xf32>
    %105 = arith.mulf %100, %104 : vector<8x8xf32>
    %106 = arith.truncf %105 : vector<8x8xf32> to vector<8x8xbf16>
    %cst_34 = arith.constant dense<0.000000e+00> : vector<8x8xf32>
    %107 = tpu.matmul %106, %91, %cst_34 {dimension_numbers = #tpu.dot_dimension_numbers<[1], [0], [0], [1], [0, 0, 1, 1], [], []>} : vector<8x8xbf16>, vector<8x8xbf16>, vector<8x8xf32> -> vector<8x8xf32>
    %c0_35 = arith.constant 0 : index
    %c24 = arith.constant 24 : index
    %108 = vector.load %arg17[%c0_35, %c24] : memref<8x32xf32, #tpu.memory_space<vmem>>, vector<8x8xf32>
    tpu.vector_store %arg17[%c0_35, %c24], %107 {strides = array<i32>} : memref<8x32xf32, #tpu.memory_space<vmem>>, vector<8x8xf32>,
    %c0_36 = arith.constant 0 : index
    %c0_37 = arith.constant 0 : index
    %109 = vector.load %arg17[%c0_36, %c0_37] : memref<8x32xf32, #tpu.memory_space<vmem>>, vector<8x32xf32>
    %110 = arith.truncf %109 : vector<8x32xf32> to vector<8x32xbf16>
    %c0_38 = arith.constant 0 : index
    %c0_39 = arith.constant 0 : index
    %c0_40 = arith.constant 0 : index
    %111 = vector.load %arg6[%c0_38, %c0_39, %c0_40] : memref<1x32x32xbf16, #tpu.memory_space<vmem>>, vector<1x32x32xbf16>
    %112 = vector.shape_cast %111 : vector<1x32x32xbf16> to vector<32x32xbf16>
    %cst_41 = arith.constant dense<0.000000e+00> : vector<8x32xf32>
    %113 = tpu.matmul %110, %112, %cst_41 {dimension_numbers = #tpu.dot_dimension_numbers<[1], [0], [0], [1], [0, 0, 1, 1], [], []>} : vector<8x32xbf16>, vector<32x32xbf16>, vector<8x32xf32> -> vector<8x32xf32>
    %c0_42 = arith.constant 0 : index
    %c0_43 = arith.constant 0 : index
    %c0_44 = arith.constant 0 : index
    %114 = vector.load %arg7[%c0_42, %c0_43, %c0_44] : memref<1x1x32xf32, #tpu.memory_space<vmem>>, vector<1x1x32xf32>
    %115 = vector.shape_cast %114 : vector<1x1x32xf32> to vector<1x32xf32>
    %116 = vector.broadcast %115 : vector<1x32xf32> to vector<8x32xf32>
    %117 = arith.addf %113, %116 : vector<8x32xf32>
    %118 = arith.addf %4, %117 : vector<8x32xf32>
    %c0_45 = arith.constant 0 : index
    %c0_46 = arith.constant 0 : index
    %c0_47 = arith.constant 0 : index
    %119 = vector.load %arg8[%c0_45, %c0_46, %c0_47] : memref<1x1x32xf32, #tpu.memory_space<vmem>>, vector<1x1x32xf32>
    %120 = vector.shape_cast %119 : vector<1x1x32xf32> to vector<1x32xf32>
    %c0_48 = arith.constant 0 : index
    %c0_49 = arith.constant 0 : index
    %c0_50 = arith.constant 0 : index
    %121 = vector.load %arg9[%c0_48, %c0_49, %c0_50] : memref<1x1x32xf32, #tpu.memory_space<vmem>>, vector<1x1x32xf32>
    %122 = vector.shape_cast %121 : vector<1x1x32xf32> to vector<1x32xf32>
    %cst_51 = arith.constant dense<0.000000e+00> : vector<8xf32>
    %123 = vector.multi_reduction <add>, %118, %cst_51 [1] : vector<8x32xf32> to vector<8xf32>
    %124 = vector.shape_cast %123 : vector<8xf32> to vector<8x1xf32>
    %cst_52 = arith.constant 3.200000e+01 : f32
    %125 = vector.broadcast %cst_52 : f32 to vector<8x1xf32>
    %126 = arith.divf %124, %125 : vector<8x1xf32>
    %127 = vector.broadcast %126 : vector<8x1xf32> to vector<8x32xf32>
    %128 = arith.subf %118, %127 : vector<8x32xf32>
    %129 = arith.mulf %128, %128 : vector<8x32xf32>
    %cst_53 = arith.constant dense<0.000000e+00> : vector<8xf32>
    %130 = vector.multi_reduction <add>, %129, %cst_53 [1] : vector<8x32xf32> to vector<8xf32>
    %131 = vector.shape_cast %130 : vector<8xf32> to vector<8x1xf32>
    %cst_54 = arith.constant 3.200000e+01 : f32
    %132 = vector.broadcast %cst_54 : f32 to vector<8x1xf32>
    %133 = arith.divf %131, %132 : vector<8x1xf32>
    %134 = vector.broadcast %126 : vector<8x1xf32> to vector<8x32xf32>
    %135 = arith.subf %118, %134 : vector<8x32xf32>
    %cst_55 = arith.constant 9.99999974E-6 : f32
    %136 = vector.broadcast %cst_55 : f32 to vector<8x1xf32>
    %137 = arith.addf %133, %136 : vector<8x1xf32>
    %138 = math.rsqrt %137 : vector<8x1xf32>
    %139 = vector.broadcast %138 : vector<8x1xf32> to vector<8x32xf32>
    %140 = arith.mulf %135, %139 : vector<8x32xf32>
    %141 = vector.broadcast %120 : vector<1x32xf32> to vector<8x32xf32>
    %142 = arith.mulf %140, %141 : vector<8x32xf32>
    %143 = vector.broadcast %122 : vector<1x32xf32> to vector<8x32xf32>
    %144 = arith.addf %142, %143 : vector<8x32xf32>
    %145 = arith.truncf %144 : vector<8x32xf32> to vector<8x32xbf16>
    %c0_56 = arith.constant 0 : index
    %c0_57 = arith.constant 0 : index
    %c0_58 = arith.constant 0 : index
    %146 = vector.load %arg12[%c0_56, %c0_57, %c0_58] : memref<1x32x64xbf16, #tpu.memory_space<vmem>>, vector<1x32x64xbf16>
    %147 = vector.shape_cast %146 : vector<1x32x64xbf16> to vector<32x64xbf16>
    %cst_59 = arith.constant dense<0.000000e+00> : vector<8x64xf32>
    %148 = tpu.matmul %145, %147, %cst_59 {dimension_numbers = #tpu.dot_dimension_numbers<[1], [0], [0], [1], [0, 0, 1, 1], [], []>} : vector<8x32xbf16>, vector<32x64xbf16>, vector<8x64xf32> -> vector<8x64xf32>
    %c0_60 = arith.constant 0 : index
    %c0_61 = arith.constant 0 : index
    %c0_62 = arith.constant 0 : index
    %149 = vector.load %arg13[%c0_60, %c0_61, %c0_62] : memref<1x1x64xf32, #tpu.memory_space<vmem>>, vector<1x1x64xf32>
    %150 = vector.shape_cast %149 : vector<1x1x64xf32> to vector<1x64xf32>
    %151 = vector.broadcast %150 : vector<1x64xf32> to vector<8x64xf32>
    %152 = arith.addf %148, %151 : vector<8x64xf32>
    %cst_63 = arith.constant 0.000000e+00 : f32
    %153 = vector.broadcast %cst_63 : f32 to vector<8x64xf32>
    %154 = arith.maximumf %152, %153 : vector<8x64xf32>
    %155 = arith.truncf %154 : vector<8x64xf32> to vector<8x64xbf16>
    %c0_64 = arith.constant 0 : index
    %c0_65 = arith.constant 0 : index
    %c0_66 = arith.constant 0 : index
    %156 = vector.load %arg14[%c0_64, %c0_65, %c0_66] : memref<1x64x32xbf16, #tpu.memory_space<vmem>>, vector<1x64x32xbf16>
    %157 = vector.shape_cast %156 : vector<1x64x32xbf16> to vector<64x32xbf16>
    %cst_67 = arith.constant dense<0.000000e+00> : vector<8x32xf32>
    %158 = tpu.matmul %155, %157, %cst_67 {dimension_numbers = #tpu.dot_dimension_numbers<[1], [0], [0], [1], [0, 0, 1, 1], [], []>} : vector<8x64xbf16>, vector<64x32xbf16>, vector<8x32xf32> -> vector<8x32xf32>
    %c0_68 = arith.constant 0 : index
    %c0_69 = arith.constant 0 : index
    %c0_70 = arith.constant 0 : index
    %159 = vector.load %arg15[%c0_68, %c0_69, %c0_70] : memref<1x1x32xf32, #tpu.memory_space<vmem>>, vector<1x1x32xf32>
    %160 = vector.shape_cast %159 : vector<1x1x32xf32> to vector<1x32xf32>
    %161 = vector.broadcast %160 : vector<1x32xf32> to vector<8x32xf32>
    %162 = arith.addf %158, %161 : vector<8x32xf32>
    %163 = arith.addf %144, %162 : vector<8x32xf32>
    %c0_71 = arith.constant 0 : index
    %c0_72 = arith.constant 0 : index
    %c0_73 = arith.constant 0 : index
    %164 = vector.load %arg10[%c0_71, %c0_72, %c0_73] : memref<1x1x32xf32, #tpu.memory_space<vmem>>, vector<1x1x32xf32>
    %165 = vector.shape_cast %164 : vector<1x1x32xf32> to vector<1x32xf32>
    %c0_74 = arith.constant 0 : index
    %c0_75 = arith.constant 0 : index
    %c0_76 = arith.constant 0 : index
    %166 = vector.load %arg11[%c0_74, %c0_75, %c0_76] : memref<1x1x32xf32, #tpu.memory_space<vmem>>, vector<1x1x32xf32>
    %167 = vector.shape_cast %166 : vector<1x1x32xf32> to vector<1x32xf32>
    %cst_77 = arith.constant dense<0.000000e+00> : vector<8xf32>
    %168 = vector.multi_reduction <add>, %163, %cst_77 [1] : vector<8x32xf32> to vector<8xf32>
    %169 = vector.shape_cast %168 : vector<8xf32> to vector<8x1xf32>
    %cst_78 = arith.constant 3.200000e+01 : f32
    %170 = vector.broadcast %cst_78 : f32 to vector<8x1xf32>
    %171 = arith.divf %169, %170 : vector<8x1xf32>
    %172 = vector.broadcast %171 : vector<8x1xf32> to vector<8x32xf32>
    %173 = arith.subf %163, %172 : vector<8x32xf32>
    %174 = arith.mulf %173, %173 : vector<8x32xf32>
    %cst_79 = arith.constant dense<0.000000e+00> : vector<8xf32>
    %175 = vector.multi_reduction <add>, %174, %cst_79 [1] : vector<8x32xf32> to vector<8xf32>
    %176 = vector.shape_cast %175 : vector<8xf32> to vector<8x1xf32>
    %cst_80 = arith.constant 3.200000e+01 : f32
    %177 = vector.broadcast %cst_80 : f32 to vector<8x1xf32>
    %178 = arith.divf %176, %177 : vector<8x1xf32>
    %179 = vector.broadcast %171 : vector<8x1xf32> to vector<8x32xf32>
    %180 = arith.subf %163, %179 : vector<8x32xf32>
    %cst_81 = arith.constant 9.99999974E-6 : f32
    %181 = vector.broadcast %cst_81 : f32 to vector<8x1xf32>
    %182 = arith.addf %178, %181 : vector<8x1xf32>
    %183 = math.rsqrt %182 : vector<8x1xf32>
    %184 = vector.broadcast %183 : vector<8x1xf32> to vector<8x32xf32>
    %185 = arith.mulf %180, %184 : vector<8x32xf32>
    %186 = vector.broadcast %165 : vector<1x32xf32> to vector<8x32xf32>
    %187 = arith.mulf %185, %186 : vector<8x32xf32>
    %188 = vector.broadcast %167 : vector<1x32xf32> to vector<8x32xf32>
    %189 = arith.addf %187, %188 : vector<8x32xf32>
    %c0_82 = arith.constant 0 : index
    %c0_83 = arith.constant 0 : index
    %c0_84 = arith.constant 0 : index
    %190 = vector.load %arg16[%c0_82, %c0_83, %c0_84] : memref<1x8x32xf32, #tpu.memory_space<vmem>>, vector<1x8x32xf32>
    %191 = vector.shape_cast %190 : vector<1x8x32xf32> to vector<8x32xf32>
    %192 = vector.shape_cast %189 : vector<8x32xf32> to vector<1x8x32xf32>
    tpu.vector_store %arg16[%c0_82, %c0_83, %c0_84], %192 {strides = array<i32>} : memref<1x8x32xf32, #tpu.memory_space<vmem>>, vector<1x8x32xf32>,
    return
  }
  func.func @transform_0(%arg0: i32, %arg1: i32) -> (i32, i32, i32) {
    %c0_i32 = arith.constant 0 : i32
    %c0_i32_0 = arith.constant 0 : i32
    %c0_i32_1 = arith.constant 0 : i32
    return %arg0, %c0_i32, %c0_i32_0 : i32, i32, i32
  }
  func.func @transform_1(%arg0: i32, %arg1: i32) -> (i32, i32) {
    %c0_i32 = arith.constant 0 : i32
    %c0_i32_0 = arith.constant 0 : i32
    %c0_i32_1 = arith.constant 0 : i32
    return %c0_i32, %c0_i32_0 : i32, i32
  }
  func.func @transform_2(%arg0: i32, %arg1: i32) -> (i32, i32, i32) {
    %c0_i32 = arith.constant 0 : i32
    %c0_i32_0 = arith.constant 0 : i32
    %c0_i32_1 = arith.constant 0 : i32
    return %arg1, %c0_i32, %c0_i32_0 : i32, i32, i32
  }
  func.func @transform_3(%arg0: i32, %arg1: i32) -> (i32, i32, i32) {
    %c0_i32 = arith.constant 0 : i32
    %c0_i32_0 = arith.constant 0 : i32
    %c0_i32_1 = arith.constant 0 : i32
    return %arg1, %c0_i32, %c0_i32_0 : i32, i32, i32
  }
  func.func @transform_4(%arg0: i32, %arg1: i32) -> (i32, i32, i32) {
    %c0_i32 = arith.constant 0 : i32
    %c0_i32_0 = arith.constant 0 : i32
    %c0_i32_1 = arith.constant 0 : i32
    return %arg1, %c0_i32, %c0_i32_0 : i32, i32, i32
  }
  func.func @transform_5(%arg0: i32, %arg1: i32) -> (i32, i32, i32) {
    %c0_i32 = arith.constant 0 : i32
    %c0_i32_0 = arith.constant 0 : i32
    %c0_i32_1 = arith.constant 0 : i32
    return %arg1, %c0_i32, %c0_i32_0 : i32, i32, i32
  }
  func.func @transform_6(%arg0: i32, %arg1: i32) -> (i32, i32, i32) {
    %c0_i32 = arith.constant 0 : i32
    %c0_i32_0 = arith.constant 0 : i32
    %c0_i32_1 = arith.constant 0 : i32
    return %arg1, %c0_i32, %c0_i32_0 : i32, i32, i32
  }
  func.func @transform_7(%arg0: i32, %arg1: i32) -> (i32, i32, i32) {
    %c0_i32 = arith.constant 0 : i32
    %c0_i32_0 = arith.constant 0 : i32
    %c0_i32_1 = arith.constant 0 : i32
    return %arg1, %c0_i32, %c0_i32_0 : i32, i32, i32
  }
  func.func @transform_8(%arg0: i32, %arg1: i32) -> (i32, i32, i32) {
    %c0_i32 = arith.constant 0 : i32
    %c0_i32_0 = arith.constant 0 : i32
    %c0_i32_1 = arith.constant 0 : i32
    return %arg1, %c0_i32, %c0_i32_0 : i32, i32, i32
  }
  func.func @transform_9(%arg0: i32, %arg1: i32) -> (i32, i32, i32) {
    %c0_i32 = arith.constant 0 : i32
    %c0_i32_0 = arith.constant 0 : i32
    %c0_i32_1 = arith.constant 0 : i32
    return %arg1, %c0_i32, %c0_i32_0 : i32, i32, i32
  }
  func.func @transform_10(%arg0: i32, %arg1: i32) -> (i32, i32, i32) {
    %c0_i32 = arith.constant 0 : i32
    %c0_i32_0 = arith.constant 0 : i32
    %c0_i32_1 = arith.constant 0 : i32
    return %arg1, %c0_i32, %c0_i32_0 : i32, i32, i32
  }
  func.func @transform_11(%arg0: i32, %arg1: i32) -> (i32, i32, i32) {
    %c0_i32 = arith.constant 0 : i32
    %c0_i32_0 = arith.constant 0 : i32
    %c0_i32_1 = arith.constant 0 : i32
    return %arg1, %c0_i32, %c0_i32_0 : i32, i32, i32
  }
  func.func @transform_12(%arg0: i32, %arg1: i32) -> (i32, i32, i32) {
    %c0_i32 = arith.constant 0 : i32
    %c0_i32_0 = arith.constant 0 : i32
    %c0_i32_1 = arith.constant 0 : i32
    return %arg1, %c0_i32, %c0_i32_0 : i32, i32, i32
  }
  func.func @transform_13(%arg0: i32, %arg1: i32) -> (i32, i32, i32) {
    %c0_i32 = arith.constant 0 : i32
    %c0_i32_0 = arith.constant 0 : i32
    %c0_i32_1 = arith.constant 0 : i32
    return %arg1, %c0_i32, %c0_i32_0 : i32, i32, i32
  }
  func.func @transform_14(%arg0: i32, %arg1: i32) -> (i32, i32, i32) {
    %c0_i32 = arith.constant 0 : i32
    %c0_i32_0 = arith.constant 0 : i32
    %c0_i32_1 = arith.constant 0 : i32
    return %arg0, %c0_i32, %c0_i32_0 : i32, i32, i32
  }
}

</mosaic_0001>

<llo_original>
// kernel: tpu_custom_call.1
$region0: #{tpu_custom_call.1}
  #allocation0 [shape = 'u32[]', space=smem, size = 0x4, offset = 0x4, fixed_abs, tag = 'smem constant byte address 0x4 - core index']
  #allocation1 [shape = 'u32[144,128]{1,0:T(1,128)}', space=vmem, size = 0x12000, scoped, tag = 'internal scratch']
  #allocation2 [shape = 'f32[8,32]{1,0:T(8,128)}', space=vmem, size = 0x1000, scoped, tag = 'scratch operand']
  %s0 = inlined_call_operand.hbm [shape: f32[2,8,32], index: 0, kind: input, shape index: {}]
  %s1 = inlined_call_operand.hbm [shape: f32[8,8], index: 1, kind: input, shape index: {}]
  %s2 = inlined_call_operand.vmem [shape: bf16[2,32,96], index: 2, kind: input, shape index: {}]
  %s3 = inlined_call_operand.vmem [shape: f32[2,1,96], index: 3, kind: input, shape index: {}]
  %s4 = inlined_call_operand.vmem [shape: bf16[2,32,32], index: 4, kind: input, shape index: {}]
  %s5 = inlined_call_operand.vmem [shape: f32[2,1,32], index: 5, kind: input, shape index: {}]
  %s6 = inlined_call_operand.vmem [shape: f32[2,1,32], index: 6, kind: input, shape index: {}]
  %s7 = inlined_call_operand.vmem [shape: f32[2,1,32], index: 7, kind: input, shape index: {}]
  %s8 = inlined_call_operand.vmem [shape: f32[2,1,32], index: 8, kind: input, shape index: {}]
  %s9 = inlined_call_operand.vmem [shape: f32[2,1,32], index: 9, kind: input, shape index: {}]
  %s10 = inlined_call_operand.vmem [shape: bf16[2,32,64], index: 10, kind: input, shape index: {}]
  %s11 = inlined_call_operand.hbm [shape: f32[2,1,64], index: 11, kind: input, shape index: {}]
  %s12 = inlined_call_operand.vmem [shape: bf16[2,64,32], index: 12, kind: input, shape index: {}]
  %s13 = inlined_call_operand.vmem [shape: f32[2,1,32], index: 13, kind: input, shape index: {}]
  %s14 = inlined_call_operand.hbm [shape: f32[2,8,32], index: 14, kind: output, shape index: {}]
  %s15 = sld [smem:[#allocation0]]
  $region105: #{tpu_custom_call.1} parent=0
    _
  %s17 = ssub.s32 1, %s15
  %s18 = scalar_select 0, %s17, %s15
  $region1: #{tpu_custom_call.1} parent=0
    #allocation3 [shape = 'u8[8192]{0}', space=vmem, size = 0x2000, scoped, tag = 'input window, operand 0']
    #allocation4 [shape = 's32[2]{0}', space=sflag, size = 0x8, scoped, tag = 'scoped memory for tpu_custom_call.1']
    #allocation5 [shape = 's32[2]{0}', space=sflag, size = 0x8, scoped, tag = 'scoped memory for tpu_custom_call.1']
    #allocation6 [shape = 'u8[4096]{0}', space=vmem, size = 0x1000, scoped, tag = 'input window, operand 1, single buffered']
    #allocation7 [shape = 's32[1]{0}', space=sflag, size = 0x4, scoped, tag = 'scoped memory for tpu_custom_call.1']
    #allocation8 [shape = 'u8[1024]{0}', space=vmem, size = 0x400, scoped, tag = 'input window, operand 11']
    #allocation9 [shape = 'u8[8192]{0}', space=vmem, size = 0x2000, scoped, tag = 'output window, operand 0']
    %19 = vsyncpa [#allocation4], 0
    %s20 = scalar_lea.sflag [#allocation4], 1
    %21 = vsyncpa %s20, 0
    %22 = vsyncpa [#allocation7], 0
    %23 = vsyncpa [#allocation5], 0
    %s24 = scalar_lea.sflag [#allocation5], 1
    %25 = vsyncpa %s24, 0
    loop: start=0, step=1, limit=6
    $region2: #{tpu_custom_call.1} parent=1 // loop_pre_header
      _
    $region3: #{tpu_custom_call.1} parent=1 // loop_header
      %s27 = sphi 0, %s31
      %p28 = scmp.ge.s32.totalorder %s27, 6
      %s34 = sphi 0, %s46
      %s35 = sphi 0, %s42
      %s36 = sphi 0, %s34
      %s37 = sphi 0, %s35
      %s38 = sphi 0, %s36
      %s39 = sphi 0, %s37
      %s49 = sphi 0, %s51
      %s52 = sphi 0, %s49
      %s53 = sphi 0, %s52
      %s69 = sphi 0, %s53
      %s73 = sphi 0, %s73
      %s75 = sphi 0, %s73
      %s76 = sphi 0, %s75
      %s90 = sphi 0, %s76
      %s96 = sphi 0, %s98
      %s99 = sphi 0, %s96
      %s100 = sphi 0, %s99
      %s116 = sphi 0, %s100
      %s122 = sphi 0, %s124
      %s125 = sphi 0, %s122
      %s126 = sphi 0, %s125
      %s142 = sphi 0, %s126
      %s148 = sphi 0, %s150
      %s151 = sphi 0, %s148
      %s152 = sphi 0, %s151
      %s168 = sphi 0, %s152
      %s174 = sphi 0, %s176
      %s177 = sphi 0, %s174
      %s178 = sphi 0, %s177
      %s194 = sphi 0, %s178
      %s200 = sphi 0, %s202
      %s203 = sphi 0, %s200
      %s204 = sphi 0, %s203
      %s220 = sphi 0, %s204
      %s226 = sphi 0, %s228
      %s229 = sphi 0, %s226
      %s230 = sphi 0, %s229
      %s246 = sphi 0, %s230
      %s252 = sphi 0, %s254
      %s255 = sphi 0, %s252
      %s256 = sphi 0, %s255
      %s272 = sphi 0, %s256
      %s278 = sphi 0, %s280
      %s281 = sphi 0, %s278
      %s282 = sphi 0, %s281
      %s298 = sphi 0, %s282
      %s304 = sphi 0, %s306
      %s307 = sphi 0, %s304
      %s308 = sphi 0, %s307
      %s324 = sphi 0, %s308
      %s330 = sphi 0, %s332
      %s333 = sphi 0, %s330
      %s334 = sphi 0, %s333
      %s350 = sphi 0, %s334
      %s356 = sphi 0, %s358
      %s359 = sphi 0, %s356
      %s360 = sphi 0, %s359
      %s376 = sphi 0, %s360
      %s382 = sphi 0, %s384
      %s385 = sphi 0, %s382
      %s386 = sphi 0, %s385
      %s402 = sphi 0, %s386
      %s408 = sphi 0, %s410
      %s411 = sphi 0, %s408
      %s412 = sphi 0, %s411
      %s428 = sphi 0, %s412
    $region4: #{tpu_custom_call.1} parent=1 // loop_header_branch
      %30 = sbr.rel (%p28) target = $region8
    $region5: #{tpu_custom_call.1} parent=1 // loop_body
      %s32 = ssub.s32 %s27, 1
      %s33 = ssub.s32 %s27, 2
      %s40 = sadd.s32 1, %s35
      %p41 = scmp.ge.s32.totalorder %s40, 2
      %s42 = scalar_select %p41, 0, %s40
      %s43 = sadd.s32 1, %s34
      %s44 = scalar_select %p41, %s43, %s34
      %p45 = scmp.ge.s32.totalorder %s44, 2
      %s46 = scalar_select %p45, 0, %s44
      %s47 = ssub.s32 %s34, %s46
      %p48 = scmp.eq.s32.totalorder %s47, 0
      %s50 = sadd.s32 %s49, 1
      %s51 = scalar_select %p48, %s49, %s50
      %p54 = pneg %p48
      %p55 = scmp.eq.s32.totalorder %s27, 3
      %p56 = por %p54, %p55
      %p57 = scmp.ne.s32.totalorder %s49, %s52
      %p58 = scmp.eq.s32.totalorder %s27, 0
      %p59 = por %p57, %p58
      %p60 = scmp.ne.s32.totalorder %s49, %s52
      %p61 = scmp.eq.s32.totalorder %s32, 3
      %p62 = por %p60, %p61
      %p63 = scmp.ne.s32.totalorder %s52, %s53
      %p64 = scmp.eq.s32.totalorder %s32, 0
      %p65 = por %p63, %p64
      %p66 = scmp.ne.s32.totalorder %s52, %s53
      %p67 = scmp.eq.s32.totalorder %s33, 3
      %p68 = por %p66, %p67
      %p70 = scmp.ne.s32.totalorder %s53, %s69
      %p71 = scmp.eq.s32.totalorder %s33, 0
      %p72 = por %p70, %p71
      %s74 = sadd.s32 %s73, 1
      %p77 = scmp.eq.s32.totalorder %s27, 3
      %p78 = scmp.ne.s32.totalorder %s73, %s75
      %p79 = scmp.eq.s32.totalorder %s27, 0
      %p80 = por %p78, %p79
      %p81 = scmp.ne.s32.totalorder %s73, %s75
      %p82 = scmp.eq.s32.totalorder %s32, 3
      %p83 = por %p81, %p82
      %p84 = scmp.ne.s32.totalorder %s75, %s76
      %p85 = scmp.eq.s32.totalorder %s32, 0
      %p86 = por %p84, %p85
      %p87 = scmp.ne.s32.totalorder %s75, %s76
      %p88 = scmp.eq.s32.totalorder %s33, 3
      %p89 = por %p87, %p88
      %p91 = scmp.ne.s32.totalorder %s76, %s90
      %p92 = scmp.eq.s32.totalorder %s33, 0
      %p93 = por %p91, %p92
      %s94 = ssub.s32 %s35, %s42
      %p95 = scmp.eq.s32.totalorder %s94, 0
      %s97 = sadd.s32 %s96, 1
      %s98 = scalar_select %p95, %s96, %s97
      %p101 = pneg %p95
      %p102 = scmp.eq.s32.totalorder %s27, 3
      %p103 = por %p101, %p102
      %p104 = scmp.ne.s32.totalorder %s96, %s99
      %p105 = scmp.eq.s32.totalorder %s27, 0
      %p106 = por %p104, %p105
      %p107 = scmp.ne.s32.totalorder %s96, %s99
      %p108 = scmp.eq.s32.totalorder %s32, 3
      %p109 = por %p107, %p108
      %p110 = scmp.ne.s32.totalorder %s99, %s100
      %p111 = scmp.eq.s32.totalorder %s32, 0
      %p112 = por %p110, %p111
      %p113 = scmp.ne.s32.totalorder %s99, %s100
      %p114 = scmp.eq.s32.totalorder %s33, 3
      %p115 = por %p113, %p114
      %p117 = scmp.ne.s32.totalorder %s100, %s116
      %p118 = scmp.eq.s32.totalorder %s33, 0
      %p119 = por %p117, %p118
      %s120 = ssub.s32 %s35, %s42
      %p121 = scmp.eq.s32.totalorder %s120, 0
      %s123 = sadd.s32 %s122, 1
      %s124 = scalar_select %p121, %s122, %s123
      %p127 = pneg %p121
      %p128 = scmp.eq.s32.totalorder %s27, 3
      %p129 = por %p127, %p128
      %p130 = scmp.ne.s32.totalorder %s122, %s125
      %p131 = scmp.eq.s32.totalorder %s27, 0
      %p132 = por %p130, %p131
      %p133 = scmp.ne.s32.totalorder %s122, %s125
      %p134 = scmp.eq.s32.totalorder %s32, 3
      %p135 = por %p133, %p134
      %p136 = scmp.ne.s32.totalorder %s125, %s126
      %p137 = scmp.eq.s32.totalorder %s32, 0
      %p138 = por %p136, %p137
      %p139 = scmp.ne.s32.totalorder %s125, %s126
      %p140 = scmp.eq.s32.totalorder %s33, 3
      %p141 = por %p139, %p140
      %p143 = scmp.ne.s32.totalorder %s126, %s142
      %p144 = scmp.eq.s32.totalorder %s33, 0
      %p145 = por %p143, %p144
      %s146 = ssub.s32 %s35, %s42
      %p147 = scmp.eq.s32.totalorder %s146, 0
      %s149 = sadd.s32 %s148, 1
      %s150 = scalar_select %p147, %s148, %s149
      %p153 = pneg %p147
      %p154 = scmp.eq.s32.totalorder %s27, 3
      %p155 = por %p153, %p154
      %p156 = scmp.ne.s32.totalorder %s148, %s151
      %p157 = scmp.eq.s32.totalorder %s27, 0
      %p158 = por %p156, %p157
      %p159 = scmp.ne.s32.totalorder %s148, %s151
      %p160 = scmp.eq.s32.totalorder %s32, 3
      %p161 = por %p159, %p160
      %p162 = scmp.ne.s32.totalorder %s151, %s152
      %p163 = scmp.eq.s32.totalorder %s32, 0
      %p164 = por %p162, %p163
      %p165 = scmp.ne.s32.totalorder %s151, %s152
      %p166 = scmp.eq.s32.totalorder %s33, 3
      %p167 = por %p165, %p166
      %p169 = scmp.ne.s32.totalorder %s152, %s168
      %p170 = scmp.eq.s32.totalorder %s33, 0
      %p171 = por %p169, %p170
      %s172 = ssub.s32 %s35, %s42
      %p173 = scmp.eq.s32.totalorder %s172, 0
      %s175 = sadd.s32 %s174, 1
      %s176 = scalar_select %p173, %s174, %s175
      %p179 = pneg %p173
      %p180 = scmp.eq.s32.totalorder %s27, 3
      %p181 = por %p179, %p180
      %p182 = scmp.ne.s32.totalorder %s174, %s177
      %p183 = scmp.eq.s32.totalorder %s27, 0
      %p184 = por %p182, %p183
      %p185 = scmp.ne.s32.totalorder %s174, %s177
      %p186 = scmp.eq.s32.totalorder %s32, 3
      %p187 = por %p185, %p186
      %p188 = scmp.ne.s32.totalorder %s177, %s178
      %p189 = scmp.eq.s32.totalorder %s32, 0
      %p190 = por %p188, %p189
      %p191 = scmp.ne.s32.totalorder %s177, %s178
      %p192 = scmp.eq.s32.totalorder %s33, 3
      %p193 = por %p191, %p192
      %p195 = scmp.ne.s32.totalorder %s178, %s194
      %p196 = scmp.eq.s32.totalorder %s33, 0
      %p197 = por %p195, %p196
      %s198 = ssub.s32 %s35, %s42
      %p199 = scmp.eq.s32.totalorder %s198, 0
      %s201 = sadd.s32 %s200, 1
      %s202 = scalar_select %p199, %s200, %s201
      %p205 = pneg %p199
      %p206 = scmp.eq.s32.totalorder %s27, 3
      %p207 = por %p205, %p206
      %p208 = scmp.ne.s32.totalorder %s200, %s203
      %p209 = scmp.eq.s32.totalorder %s27, 0
      %p210 = por %p208, %p209
      %p211 = scmp.ne.s32.totalorder %s200, %s203
      %p212 = scmp.eq.s32.totalorder %s32, 3
      %p213 = por %p211, %p212
      %p214 = scmp.ne.s32.totalorder %s203, %s204
      %p215 = scmp.eq.s32.totalorder %s32, 0
      %p216 = por %p214, %p215
      %p217 = scmp.ne.s32.totalorder %s203, %s204
      %p218 = scmp.eq.s32.totalorder %s33, 3
      %p219 = por %p217, %p218
      %p221 = scmp.ne.s32.totalorder %s204, %s220
      %p222 = scmp.eq.s32.totalorder %s33, 0
      %p223 = por %p221, %p222
      %s224 = ssub.s32 %s35, %s42
      %p225 = scmp.eq.s32.totalorder %s224, 0
      %s227 = sadd.s32 %s226, 1
      %s228 = scalar_select %p225, %s226, %s227
      %p231 = pneg %p225
      %p232 = scmp.eq.s32.totalorder %s27, 3
      %p233 = por %p231, %p232
      %p234 = scmp.ne.s32.totalorder %s226, %s229
      %p235 = scmp.eq.s32.totalorder %s27, 0
      %p236 = por %p234, %p235
      %p237 = scmp.ne.s32.totalorder %s226, %s229
      %p238 = scmp.eq.s32.totalorder %s32, 3
      %p239 = por %p237, %p238
      %p240 = scmp.ne.s32.totalorder %s229, %s230
      %p241 = scmp.eq.s32.totalorder %s32, 0
      %p242 = por %p240, %p241
      %p243 = scmp.ne.s32.totalorder %s229, %s230
      %p244 = scmp.eq.s32.totalorder %s33, 3
      %p245 = por %p243, %p244
      %p247 = scmp.ne.s32.totalorder %s230, %s246
      %p248 = scmp.eq.s32.totalorder %s33, 0
      %p249 = por %p247, %p248
      %s250 = ssub.s32 %s35, %s42
      %p251 = scmp.eq.s32.totalorder %s250, 0
      %s253 = sadd.s32 %s252, 1
      %s254 = scalar_select %p251, %s252, %s253
      %p257 = pneg %p251
      %p258 = scmp.eq.s32.totalorder %s27, 3
      %p259 = por %p257, %p258
      %p260 = scmp.ne.s32.totalorder %s252, %s255
      %p261 = scmp.eq.s32.totalorder %s27, 0
      %p262 = por %p260, %p261
      %p263 = scmp.ne.s32.totalorder %s252, %s255
      %p264 = scmp.eq.s32.totalorder %s32, 3
      %p265 = por %p263, %p264
      %p266 = scmp.ne.s32.totalorder %s255, %s256
      %p267 = scmp.eq.s32.totalorder %s32, 0
      %p268 = por %p266, %p267
      %p269 = scmp.ne.s32.totalorder %s255, %s256
      %p270 = scmp.eq.s32.totalorder %s33, 3
      %p271 = por %p269, %p270
      %p273 = scmp.ne.s32.totalorder %s256, %s272
      %p274 = scmp.eq.s32.totalorder %s33, 0
      %p275 = por %p273, %p274
      %s276 = ssub.s32 %s35, %s42
      %p277 = scmp.eq.s32.totalorder %s276, 0
      %s279 = sadd.s32 %s278, 1
      %s280 = scalar_select %p277, %s278, %s279
      %p283 = pneg %p277
      %p284 = scmp.eq.s32.totalorder %s27, 3
      %p285 = por %p283, %p284
      %p286 = scmp.ne.s32.totalorder %s278, %s281
      %p287 = scmp.eq.s32.totalorder %s27, 0
      %p288 = por %p286, %p287
      %p289 = scmp.ne.s32.totalorder %s278, %s281
      %p290 = scmp.eq.s32.totalorder %s32, 3
      %p291 = por %p289, %p290
      %p292 = scmp.ne.s32.totalorder %s281, %s282
      %p293 = scmp.eq.s32.totalorder %s32, 0
      %p294 = por %p292, %p293
      %p295 = scmp.ne.s32.totalorder %s281, %s282
      %p296 = scmp.eq.s32.totalorder %s33, 3
      %p297 = por %p295, %p296
      %p299 = scmp.ne.s32.totalorder %s282, %s298
      %p300 = scmp.eq.s32.totalorder %s33, 0
      %p301 = por %p299, %p300
      %s302 = ssub.s32 %s35, %s42
      %p303 = scmp.eq.s32.totalorder %s302, 0
      %s305 = sadd.s32 %s304, 1
      %s306 = scalar_select %p303, %s304, %s305
      %p309 = pneg %p303
      %p310 = scmp.eq.s32.totalorder %s27, 3
      %p311 = por %p309, %p310
      %p312 = scmp.ne.s32.totalorder %s304, %s307
      %p313 = scmp.eq.s32.totalorder %s27, 0
      %p314 = por %p312, %p313
      %p315 = scmp.ne.s32.totalorder %s304, %s307
      %p316 = scmp.eq.s32.totalorder %s32, 3
      %p317 = por %p315, %p316
      %p318 = scmp.ne.s32.totalorder %s307, %s308
      %p319 = scmp.eq.s32.totalorder %s32, 0
      %p320 = por %p318, %p319
      %p321 = scmp.ne.s32.totalorder %s307, %s308
      %p322 = scmp.eq.s32.totalorder %s33, 3
      %p323 = por %p321, %p322
      %p325 = scmp.ne.s32.totalorder %s308, %s324
      %p326 = scmp.eq.s32.totalorder %s33, 0
      %p327 = por %p325, %p326
      %s328 = ssub.s32 %s35, %s42
      %p329 = scmp.eq.s32.totalorder %s328, 0
      %s331 = sadd.s32 %s330, 1
      %s332 = scalar_select %p329, %s330, %s331
      %p335 = pneg %p329
      %p336 = scmp.eq.s32.totalorder %s27, 3
      %p337 = por %p335, %p336
      %p338 = scmp.ne.s32.totalorder %s330, %s333
      %p339 = scmp.eq.s32.totalorder %s27, 0
      %p340 = por %p338, %p339
      %p341 = scmp.ne.s32.totalorder %s330, %s333
      %p342 = scmp.eq.s32.totalorder %s32, 3
      %p343 = por %p341, %p342
      %p344 = scmp.ne.s32.totalorder %s333, %s334
      %p345 = scmp.eq.s32.totalorder %s32, 0
      %p346 = por %p344, %p345
      %p347 = scmp.ne.s32.totalorder %s333, %s334
      %p348 = scmp.eq.s32.totalorder %s33, 3
      %p349 = por %p347, %p348
      %p351 = scmp.ne.s32.totalorder %s334, %s350
      %p352 = scmp.eq.s32.totalorder %s33, 0
      %p353 = por %p351, %p352
      %s354 = ssub.s32 %s35, %s42
      %p355 = scmp.eq.s32.totalorder %s354, 0
      %s357 = sadd.s32 %s356, 1
      %s358 = scalar_select %p355, %s356, %s357
      %p361 = pneg %p355
      %p362 = scmp.eq.s32.totalorder %s27, 3
      %p363 = por %p361, %p362
      %p364 = scmp.ne.s32.totalorder %s356, %s359
      %p365 = scmp.eq.s32.totalorder %s27, 0
      %p366 = por %p364, %p365
      %p367 = scmp.ne.s32.totalorder %s356, %s359
      %p368 = scmp.eq.s32.totalorder %s32, 3
      %p369 = por %p367, %p368
      %p370 = scmp.ne.s32.totalorder %s359, %s360
      %p371 = scmp.eq.s32.totalorder %s32, 0
      %p372 = por %p370, %p371
      %p373 = scmp.ne.s32.totalorder %s359, %s360
      %p374 = scmp.eq.s32.totalorder %s33, 3
      %p375 = por %p373, %p374
      %p377 = scmp.ne.s32.totalorder %s360, %s376
      %p378 = scmp.eq.s32.totalorder %s33, 0
      %p379 = por %p377, %p378
      %s380 = ssub.s32 %s35, %s42
      %p381 = scmp.eq.s32.totalorder %s380, 0
      %s383 = sadd.s32 %s382, 1
      %s384 = scalar_select %p381, %s382, %s383
      %p387 = pneg %p381
      %p388 = scmp.eq.s32.totalorder %s27, 3
      %p389 = por %p387, %p388
      %p390 = scmp.ne.s32.totalorder %s382, %s385
      %p391 = scmp.eq.s32.totalorder %s27, 0
      %p392 = por %p390, %p391
      %p393 = scmp.ne.s32.totalorder %s382, %s385
      %p394 = scmp.eq.s32.totalorder %s32, 3
      %p395 = por %p393, %p394
      %p396 = scmp.ne.s32.totalorder %s385, %s386
      %p397 = scmp.eq.s32.totalorder %s32, 0
      %p398 = por %p396, %p397
      %p399 = scmp.ne.s32.totalorder %s385, %s386
      %p400 = scmp.eq.s32.totalorder %s33, 3
      %p401 = por %p399, %p400
      %p403 = scmp.ne.s32.totalorder %s386, %s402
      %p404 = scmp.eq.s32.totalorder %s33, 0
      %p405 = por %p403, %p404
      %s406 = ssub.s32 %s34, %s46
      %p407 = scmp.eq.s32.totalorder %s406, 0
      %s409 = sadd.s32 %s408, 1
      %s410 = scalar_select %p407, %s408, %s409
      %p413 = pneg %p407
      %p414 = scmp.eq.s32.totalorder %s27, 3
      %p415 = por %p413, %p414
      %p416 = scmp.ne.s32.totalorder %s408, %s411
      %p417 = scmp.eq.s32.totalorder %s27, 0
      %p418 = por %p416, %p417
      %p419 = scmp.ne.s32.totalorder %s408, %s411
      %p420 = scmp.eq.s32.totalorder %s32, 3
      %p421 = por %p419, %p420
      %p422 = scmp.ne.s32.totalorder %s411, %s412
      %p423 = scmp.eq.s32.totalorder %s32, 0
      %p424 = por %p422, %p423
      %p425 = scmp.ne.s32.totalorder %s411, %s412
      %p426 = scmp.eq.s32.totalorder %s33, 3
      %p427 = por %p425, %p426
      %p429 = scmp.ne.s32.totalorder %s412, %s428
      %p430 = scmp.eq.s32.totalorder %s33, 0
      %p431 = por %p429, %p430
      %p432 = scmp.le.s32.totalorder 1, %s27
      %p433 = scmp.lt.s32.totalorder %s27, 5
      %p434 = pnand %p432, %p433
      %p435 = pneg %p434
      // Predicated region
      $region9: #{tpu_custom_call.1} parent=5 // pred_check
        _
      $region10: #{tpu_custom_call.1} parent=5 // pred_check_branch
        %437 = sbr.rel (%p434) target = $region12
      $region11: #{tpu_custom_call.1} parent=5 // pred_region
        %s438 = ssub.s32 %s27, 1
        // Predicated region
        $region13: #{tpu_custom_call.1} parent=11 // pred_check
          %p439 = pneg %p86
        $region14: #{tpu_custom_call.1} parent=11 // pred_check_branch
          %441 = sbr.rel (%p439) target = $region16
        $region15: #{tpu_custom_call.1} parent=11 // pred_region
          %s443 = ssub.s32 128, 128
          %444 = vsyncadd [#allocation7], %s443
          %s446 = sshll.u32 [#allocation6], 4
          %s447 = int_to_ptr.vmem [resolvable:$true] %s446
          %449 = dma.hbm_to_vmem [thread:$0]  %s1, 128, %s447, [#allocation7]
        $region16: #{tpu_custom_call.1} parent=11 // pred_fallthru
          _
      $region12: #{tpu_custom_call.1} parent=5 // pred_fallthru
        _
      %p450 = scmp.lt.s32.totalorder %s27, 4
      // Predicated region
      $region17: #{tpu_custom_call.1} parent=5 // pred_check
        %p451 = pneg %p450
      $region18: #{tpu_custom_call.1} parent=5 // pred_check_branch
        %453 = sbr.rel (%p451) target = $region20
      $region19: #{tpu_custom_call.1} parent=5 // pred_region
        // Predicated region
        $region21: #{tpu_custom_call.1} parent=19 // pred_check
          %p454 = pneg %p59
        $region22: #{tpu_custom_call.1} parent=19 // pred_check_branch
          %456 = sbr.rel (%p454) target = $region24
        $region23: #{tpu_custom_call.1} parent=19 // pred_region
          %s457 = sand.u32 %s27, 1
          %s458 = scalar_lea.sflag [#allocation4], %s457
          %s459 = sand.u32 %s49, 1
          %s460 = smul.addr %s459, 8
          %s461 = scalar_lea.vmem [#allocation3], %s460
          %s463 = ssub.s32 128, 128
          %464 = vsyncadd %s458, %s463
          %s465 = smul.addr %s34, 128
          %s466 = scalar_lea.hbm %s0, %s465
          %s468 = sshll.u32 %s461, 4
          %s469 = int_to_ptr.vmem [resolvable:$true] %s468
          %471 = dma.hbm_to_vmem [thread:$0]  %s466, 128, %s469, %s458
        $region24: #{tpu_custom_call.1} parent=19 // pred_fallthru
          _
        // Predicated region
        $region25: #{tpu_custom_call.1} parent=19 // pred_check
          %p472 = pneg %p106
        $region26: #{tpu_custom_call.1} parent=19 // pred_check_branch
          %474 = sbr.rel (%p472) target = $region28
        $region27: #{tpu_custom_call.1} parent=19 // pred_region
          %p475 = scmp.lt.s32.totalorder %s35, 1
          %s476 = scalar_select %p475, %s35, 1
          %s477 = smul.addr %s476, 4
          %s478 = smul.addr %s477, 4
          %s479 = scalar_lea.vmem %s2, %s478
        $region28: #{tpu_custom_call.1} parent=19 // pred_fallthru
          _
        // Predicated region
        $region29: #{tpu_custom_call.1} parent=19 // pred_check
          %p480 = pneg %p132
        $region30: #{tpu_custom_call.1} parent=19 // pred_check_branch
          %482 = sbr.rel (%p480) target = $region32
        $region31: #{tpu_custom_call.1} parent=19 // pred_region
          %p483 = scmp.lt.s32.totalorder %s35, 1
          %s484 = scalar_select %p483, %s35, 1
          %s485 = scalar_lea.vmem %s3, %s484
        $region32: #{tpu_custom_call.1} parent=19 // pred_fallthru
          _
        // Predicated region
        $region33: #{tpu_custom_call.1} parent=19 // pred_check
          %p486 = pneg %p158
        $region34: #{tpu_custom_call.1} parent=19 // pred_check_branch
          %488 = sbr.rel (%p486) target = $region36
        $region35: #{tpu_custom_call.1} parent=19 // pred_region
          %p489 = scmp.lt.s32.totalorder %s35, 1
          %s490 = scalar_select %p489, %s35, 1
          %s491 = smul.addr %s490, 4
          %s492 = smul.addr %s491, 4
          %s493 = scalar_lea.vmem %s4, %s492
        $region36: #{tpu_custom_call.1} parent=19 // pred_fallthru
          _
        // Predicated region
        $region37: #{tpu_custom_call.1} parent=19 // pred_check
          %p494 = pneg %p184
        $region38: #{tpu_custom_call.1} parent=19 // pred_check_branch
          %496 = sbr.rel (%p494) target = $region40
        $region39: #{tpu_custom_call.1} parent=19 // pred_region
          %p497 = scmp.lt.s32.totalorder %s35, 1
          %s498 = scalar_select %p497, %s35, 1
          %s499 = scalar_lea.vmem %s5, %s498
        $region40: #{tpu_custom_call.1} parent=19 // pred_fallthru
          _
        // Predicated region
        $region41: #{tpu_custom_call.1} parent=19 // pred_check
          %p500 = pneg %p210
        $region42: #{tpu_custom_call.1} parent=19 // pred_check_branch
          %502 = sbr.rel (%p500) target = $region44
        $region43: #{tpu_custom_call.1} parent=19 // pred_region
          %p503 = scmp.lt.s32.totalorder %s35, 1
          %s504 = scalar_select %p503, %s35, 1
          %s505 = scalar_lea.vmem %s6, %s504
        $region44: #{tpu_custom_call.1} parent=19 // pred_fallthru
          _
        // Predicated region
        $region45: #{tpu_custom_call.1} parent=19 // pred_check
          %p506 = pneg %p236
        $region46: #{tpu_custom_call.1} parent=19 // pred_check_branch
          %508 = sbr.rel (%p506) target = $region48
        $region47: #{tpu_custom_call.1} parent=19 // pred_region
          %p509 = scmp.lt.s32.totalorder %s35, 1
          %s510 = scalar_select %p509, %s35, 1
          %s511 = scalar_lea.vmem %s7, %s510
        $region48: #{tpu_custom_call.1} parent=19 // pred_fallthru
          _
        // Predicated region
        $region49: #{tpu_custom_call.1} parent=19 // pred_check
          %p512 = pneg %p262
        $region50: #{tpu_custom_call.1} parent=19 // pred_check_branch
          %514 = sbr.rel (%p512) target = $region52
        $region51: #{tpu_custom_call.1} parent=19 // pred_region
          %p515 = scmp.lt.s32.totalorder %s35, 1
          %s516 = scalar_select %p515, %s35, 1
          %s517 = scalar_lea.vmem %s8, %s516
        $region52: #{tpu_custom_call.1} parent=19 // pred_fallthru
          _
        // Predicated region
        $region53: #{tpu_custom_call.1} parent=19 // pred_check
          %p518 = pneg %p288
        $region54: #{tpu_custom_call.1} parent=19 // pred_check_branch
          %520 = sbr.rel (%p518) target = $region56
        $region55: #{tpu_custom_call.1} parent=19 // pred_region
          %p521 = scmp.lt.s32.totalorder %s35, 1
          %s522 = scalar_select %p521, %s35, 1
          %s523 = scalar_lea.vmem %s9, %s522
        $region56: #{tpu_custom_call.1} parent=19 // pred_fallthru
          _
        // Predicated region
        $region57: #{tpu_custom_call.1} parent=19 // pred_check
          %p524 = pneg %p314
        $region58: #{tpu_custom_call.1} parent=19 // pred_check_branch
          %526 = sbr.rel (%p524) target = $region60
        $region59: #{tpu_custom_call.1} parent=19 // pred_region
          %p527 = scmp.lt.s32.totalorder %s35, 1
          %s528 = scalar_select %p527, %s35, 1
          %s529 = smul.addr %s528, 4
          %s530 = smul.addr %s529, 4
          %s531 = scalar_lea.vmem %s10, %s530
        $region60: #{tpu_custom_call.1} parent=19 // pred_fallthru
          _
        // Predicated region
        $region61: #{tpu_custom_call.1} parent=19 // pred_check
          %p532 = pneg %p340
        $region62: #{tpu_custom_call.1} parent=19 // pred_check_branch
          %534 = sbr.rel (%p532) target = $region64
        $region63: #{tpu_custom_call.1} parent=19 // pred_region
          %s535 = sand.u32 %s27, 1
          %s536 = scalar_lea.sflag [#allocation4], %s535
          %s537 = sand.u32 %s330, 1
          %s538 = scalar_lea.vmem [#allocation8], %s537
          %s540 = ssub.s32 16, 16
          %541 = vsyncadd %s536, %s540
          %s542 = smul.addr %s35, 16
          %s543 = scalar_lea.hbm %s11, %s542
          %s545 = sshll.u32 %s538, 4
          %s546 = int_to_ptr.vmem [resolvable:$true] %s545
          %548 = dma.hbm_to_vmem [thread:$0]  %s543, 16, %s546, %s536
        $region64: #{tpu_custom_call.1} parent=19 // pred_fallthru
          _
        // Predicated region
        $region65: #{tpu_custom_call.1} parent=19 // pred_check
          %p549 = pneg %p366
        $region66: #{tpu_custom_call.1} parent=19 // pred_check_branch
          %551 = sbr.rel (%p549) target = $region68
        $region67: #{tpu_custom_call.1} parent=19 // pred_region
          %p552 = scmp.lt.s32.totalorder %s35, 1
          %s553 = scalar_select %p552, %s35, 1
          %s554 = smul.addr %s553, 8
          %s555 = smul.addr %s554, 4
          %s556 = scalar_lea.vmem %s12, %s555
        $region68: #{tpu_custom_call.1} parent=19 // pred_fallthru
          _
        // Predicated region
        $region69: #{tpu_custom_call.1} parent=19 // pred_check
          %p557 = pneg %p392
        $region70: #{tpu_custom_call.1} parent=19 // pred_check_branch
          %559 = sbr.rel (%p557) target = $region72
        $region71: #{tpu_custom_call.1} parent=19 // pred_region
          %p560 = scmp.lt.s32.totalorder %s35, 1
          %s561 = scalar_select %p560, %s35, 1
          %s562 = scalar_lea.vmem %s13, %s561
        $region72: #{tpu_custom_call.1} parent=19 // pred_fallthru
          _
      $region20: #{tpu_custom_call.1} parent=5 // pred_fallthru
        _
      %p563 = scmp.le.s32.totalorder 1, %s27
      %p564 = scmp.lt.s32.totalorder %s27, 5
      %p565 = pnand %p563, %p564
      %p566 = pneg %p565
      // Predicated region
      $region73: #{tpu_custom_call.1} parent=5 // pred_check
        _
      $region74: #{tpu_custom_call.1} parent=5 // pred_check_branch
        %568 = sbr.rel (%p565) target = $region76
      $region75: #{tpu_custom_call.1} parent=5 // pred_region
        %s569 = ssub.s32 %s27, 1
        %s570 = sand.u32 %s32, 1
        %s571 = scalar_lea.sflag [#allocation4], %s570
        %s572 = sand.u32 %s52, 1
        %s573 = smul.addr %s572, 8
        %s574 = scalar_lea.vmem [#allocation3], %s573
        // Predicated region
        $region77: #{tpu_custom_call.1} parent=75 // pred_check
          %p575 = pneg %p65
        $region78: #{tpu_custom_call.1} parent=75 // pred_check_branch
          %577 = sbr.rel (%p575) target = $region80
        $region79: #{tpu_custom_call.1} parent=75 // pred_region
          %578 = dma.done %s571, 128
        $region80: #{tpu_custom_call.1} parent=75 // pred_fallthru
          _
        // Predicated region
        $region81: #{tpu_custom_call.1} parent=75 // pred_check
          %p579 = pneg %p86
        $region82: #{tpu_custom_call.1} parent=75 // pred_check_branch
          %581 = sbr.rel (%p579) target = $region84
        $region83: #{tpu_custom_call.1} parent=75 // pred_region
          %582 = dma.done [#allocation7], 128
        $region84: #{tpu_custom_call.1} parent=75 // pred_fallthru
          _
        %s583 = sand.u32 %s32, 1
        %s584 = scalar_lea.sflag [#allocation4], %s583
        %s585 = sand.u32 %s333, 1
        %s586 = scalar_lea.vmem [#allocation8], %s585
        // Predicated region
        $region85: #{tpu_custom_call.1} parent=75 // pred_check
          %p587 = pneg %p346
        $region86: #{tpu_custom_call.1} parent=75 // pred_check_branch
          %589 = sbr.rel (%p587) target = $region88
        $region87: #{tpu_custom_call.1} parent=75 // pred_region
          %590 = dma.done %s584, 16
        $region88: #{tpu_custom_call.1} parent=75 // pred_fallthru
          _
        %s591 = sand.u32 %s32, 1
        %s592 = scalar_lea.sflag [#allocation4], %s591
        %s593 = sand.u32 %s52, 1
        %s594 = smul.addr %s593, 8
        %s595 = scalar_lea.vmem [#allocation3], %s594
        %p596 = pneg %p65
        %p597 = pneg %p62
        %p598 = pneg %p86
        %p599 = pneg %p83
        %p600 = scmp.lt.s32.totalorder %s37, 1
        %s601 = scalar_select %p600, %s37, 1
        %s602 = smul.addr %s601, 4
        %s603 = smul.addr %s602, 4
        %s604 = scalar_lea.vmem %s2, %s603
        %p605 = pneg %p112
        %p606 = pneg %p109
        %p607 = scmp.lt.s32.totalorder %s37, 1
        %s608 = scalar_select %p607, %s37, 1
        %s609 = scalar_lea.vmem %s3, %s608
        %p610 = pneg %p138
        %p611 = pneg %p135
        %p612 = scmp.lt.s32.totalorder %s37, 1
        %s613 = scalar_select %p612, %s37, 1
        %s614 = smul.addr %s613, 4
        %s615 = smul.addr %s614, 4
        %s616 = scalar_lea.vmem %s4, %s615
        %p617 = pneg %p164
        %p618 = pneg %p161
        %p619 = scmp.lt.s32.totalorder %s37, 1
        %s620 = scalar_select %p619, %s37, 1
        %s621 = scalar_lea.vmem %s5, %s620
        %p622 = pneg %p190
        %p623 = pneg %p187
        %p624 = scmp.lt.s32.totalorder %s37, 1
        %s625 = scalar_select %p624, %s37, 1
        %s626 = scalar_lea.vmem %s6, %s625
        %p627 = pneg %p216
        %p628 = pneg %p213
        %p629 = scmp.lt.s32.totalorder %s37, 1
        %s630 = scalar_select %p629, %s37, 1
        %s631 = scalar_lea.vmem %s7, %s630
        %p632 = pneg %p242
        %p633 = pneg %p239
        %p634 = scmp.lt.s32.totalorder %s37, 1
        %s635 = scalar_select %p634, %s37, 1
        %s636 = scalar_lea.vmem %s8, %s635
        %p637 = pneg %p268
        %p638 = pneg %p265
        %p639 = scmp.lt.s32.totalorder %s37, 1
        %s640 = scalar_select %p639, %s37, 1
        %s641 = scalar_lea.vmem %s9, %s640
        %p642 = pneg %p294
        %p643 = pneg %p291
        %p644 = scmp.lt.s32.totalorder %s37, 1
        %s645 = scalar_select %p644, %s37, 1
        %s646 = smul.addr %s645, 4
        %s647 = smul.addr %s646, 4
        %s648 = scalar_lea.vmem %s10, %s647
        %p649 = pneg %p320
        %p650 = pneg %p317
        %s651 = sand.u32 %s32, 1
        %s652 = scalar_lea.sflag [#allocation4], %s651
        %s653 = sand.u32 %s333, 1
        %s654 = scalar_lea.vmem [#allocation8], %s653
        %p655 = pneg %p346
        %p656 = pneg %p343
        %p657 = scmp.lt.s32.totalorder %s37, 1
        %s658 = scalar_select %p657, %s37, 1
        %s659 = smul.addr %s658, 8
        %s660 = smul.addr %s659, 4
        %s661 = scalar_lea.vmem %s12, %s660
        %p662 = pneg %p372
        %p663 = pneg %p369
        %p664 = scmp.lt.s32.totalorder %s37, 1
        %s665 = scalar_select %p664, %s37, 1
        %s666 = scalar_lea.vmem %s13, %s665
        %p667 = pneg %p398
        %p668 = pneg %p395
        %p669 = pneg %p424
        %p670 = pneg %p421
        %s671 = sand.u32 %s411, 1
        %s672 = scalar_lea.sflag [#allocation5], %s671
        %s673 = sand.u32 %s411, 1
        %s674 = smul.addr %s673, 8
        %s675 = scalar_lea.vmem [#allocation9], %s674
        %p676 = scmp.lt.s32.totalorder %s37, 1
        %s677 = scalar_select %p676, %s37, 1
        %s678 = smul.addr %s677, 4
        %s679 = smul.addr %s678, 4
        %s680 = scalar_lea.vmem %s2, %s679
        %p681 = scmp.lt.s32.totalorder %s37, 1
        %s682 = scalar_select %p681, %s37, 1
        %s683 = scalar_lea.vmem %s3, %s682
        %p684 = scmp.lt.s32.totalorder %s37, 1
        %s685 = scalar_select %p684, %s37, 1
        %s686 = smul.addr %s685, 4
        %s687 = smul.addr %s686, 4
        %s688 = scalar_lea.vmem %s4, %s687
        %p689 = scmp.lt.s32.totalorder %s37, 1
        %s690 = scalar_select %p689, %s37, 1
        %s691 = scalar_lea.vmem %s5, %s690
        %p692 = scmp.lt.s32.totalorder %s37, 1
        %s693 = scalar_select %p692, %s37, 1
        %s694 = scalar_lea.vmem %s6, %s693
        %p695 = scmp.lt.s32.totalorder %s37, 1
        %s696 = scalar_select %p695, %s37, 1
        %s697 = scalar_lea.vmem %s7, %s696
        %p698 = scmp.lt.s32.totalorder %s37, 1
        %s699 = scalar_select %p698, %s37, 1
        %s700 = scalar_lea.vmem %s8, %s699
        %p701 = scmp.lt.s32.totalorder %s37, 1
        %s702 = scalar_select %p701, %s37, 1
        %s703 = scalar_lea.vmem %s9, %s702
        %p704 = scmp.lt.s32.totalorder %s37, 1
        %s705 = scalar_select %p704, %s37, 1
        %s706 = smul.addr %s705, 4
        %s707 = smul.addr %s706, 4
        %s708 = scalar_lea.vmem %s10, %s707
        %p709 = scmp.lt.s32.totalorder %s37, 1
        %s710 = scalar_select %p709, %s37, 1
        %s711 = smul.addr %s710, 8
        %s712 = smul.addr %s711, 4
        %s713 = scalar_lea.vmem %s12, %s712
        %p714 = scmp.lt.s32.totalorder %s37, 1
        %s715 = scalar_select %p714, %s37, 1
        %s716 = scalar_lea.vmem %s13, %s715
        %p718 = scmp.eq.s32.totalorder %s37, 0
        // Predicated region
        $region89: #{tpu_custom_call.1} parent=75 // pred_check
          %p719 = pneg %p718
        $region90: #{tpu_custom_call.1} parent=75 // pred_check_branch
          %721 = sbr.rel (%p719) target = $region92
        $region91: #{tpu_custom_call.1} parent=75 // pred_region
          %v722 = vld [vmem:[%s574] sm:$0xff]
          %vm723 = vcmask 261120
          %724 = vst.msk [vmem:[%s675] sm:$0xff] %vm723, %v722
        $region92: #{tpu_custom_call.1} parent=75 // pred_fallthru
          _
        %v725 = vld [vmem:[%s675] sm:$0xff]
        %v726 = vld [vmem:[#allocation6] sm:$0xff]
        %v727 = vpack.c.bf16 %v725, %v725
        %v728 = vld [vmem:[%s680] sm:$0xf]
        %v729 = vld [vmem:[%s680 + $0x4] sm:$0xf]
        %v730 = vld [vmem:[%s680 + $0x8] sm:$0xf]
        %v731 = vld [vmem:[%s680 + $0xc] sm:$0xf]
        %v732 = vld [vmem:[%s683] sm:$0x1]
        %v734 = vlaneseq
        %v735 = vshrl.u32 %v734, 7
        %v736 = vsub.s32 0, %v735
        %v737 = vrot.slane %v732, %v736
        %v743 = vunpack.c.l.b16 %v728
        %v744 = vunpack.c.l.b16 %v729
        %v745 = vunpack.c.l.b16 %v730
        %v746 = vunpack.c.l.b16 %v731
        %v747 = vpack.c.b16 %v744, %v743
        %v748 = vpack.c.b16 %v746, %v745
        %vm751 = vcmask 261120
        %v753 = vsel %vm751, %v727, 0
        %755 = vmatprep.subr.bf16.mxu0 0
        %756 = vmatpush1.bf16.msra.mxu0 %v747
        %757 = vmatprep.subr.bf16.mxu0 0
        %758 = vmatpush1.bf16.msra.mxu0 %v748
        %759 = vmatprep.subr.bf16.mxu0 0
        %760 = vmatpush1.bf16.msra.mxu0 0
        %761 = vmatprep.subr.bf16.mxu0 0
        %762 = vmatpush1.bf16.msra.mxu0 0
        %763 = vmatprep.subr.bf16.mxu0 0
        %764 = vmatpush1.bf16.msra.mxu0 0
        %765 = vmatprep.subr.bf16.mxu0 0
        %766 = vmatpush1.bf16.msra.mxu0 0
        %767 = vmatprep.subr.bf16.mxu0 0
        %768 = vmatpush1.bf16.msra.mxu0 0
        %769 = vmatprep.subr.bf16.mxu0 0
        %770 = vmatpush1.bf16.msra.mxu0 0
        %771 = vmatprep.subr.bf16.mxu0 0
        %772 = vmatpush1.bf16.msra.mxu0 0
        %773 = vmatprep.subr.bf16.mxu0 0
        %774 = vmatpush1.bf16.msra.mxu0 0
        %775 = vmatprep.subr.bf16.mxu0 0
        %776 = vmatpush1.bf16.msra.mxu0 0
        %777 = vmatprep.subr.bf16.mxu0 0
        %778 = vmatpush1.bf16.msra.mxu0 0
        %779 = vmatprep.subr.bf16.mxu0 0
        %780 = vmatpush1.bf16.msra.mxu0 0
        %781 = vmatprep.subr.bf16.mxu0 0
        %782 = vmatpush1.bf16.msra.mxu0 0
        %783 = vmatprep.subr.bf16.mxu0 0
        %784 = vmatpush1.bf16.msra.mxu0 0
        %785 = vmatprep.subr.bf16.mxu0 0
        %786 = vmatpush1.bf16.msra.mxu0 0
        %787 = vmatprep.mubr.bf16.mxu0 0
        %788 = vmatmul.mubr.bf16.gmra.mrb[0].mxu0 %v753
        %v789 = vpop.f32.mrb[0].mxu0
        %v790 = vadd.f32 %v737, %v789
        %v791 = vpop.f32.mrb[0].mxu0
        %v792 = vpop.f32.mrb[0].mxu0
        %v793 = vpop.f32.mrb[0].mxu0
        %794 = vdwg.mxu0
        %v795 = vpack.c.bf16 %v790, %v790
        %797 = vrot.lane.b32.xlu0 %v795, 96
        %v798 = vpop.permute.xlu0 %797
        %vm799 = vcmask 64512
        %v801 = vsel %vm799, %v795, 0
        %v804 = vsel %vm799, %v798, 0
        %806 = vmatprep.subr.bf16.mxu0 0
        %807 = vmatpush1.bf16.xpose.msra.mxu0 %v804
        %808 = vmatprep.subr.bf16.mxu0 0
        %809 = vmatpush1.bf16.xpose.msra.mxu0 0
        %810 = vmatprep.subr.bf16.mxu0 0
        %811 = vmatpush1.bf16.xpose.msra.mxu0 0
        %812 = vmatprep.subr.bf16.mxu0 0
        %813 = vmatpush1.bf16.xpose.msra.mxu0 0
        %814 = vmatprep.subr.bf16.mxu0 0
        %815 = vmatpush1.bf16.xpose.msra.mxu0 0
        %816 = vmatprep.subr.bf16.mxu0 0
        %817 = vmatpush1.bf16.xpose.msra.mxu0 0
        %818 = vmatprep.subr.bf16.mxu0 0
        %819 = vmatpush1.bf16.xpose.msra.mxu0 0
        %820 = vmatprep.subr.bf16.mxu0 0
        %821 = vmatpush1.bf16.xpose.msra.mxu0 0
        %822 = vmatprep.subr.bf16.mxu0 0
        %823 = vmatpush1.bf16.xpose.msra.mxu0 0
        %824 = vmatprep.subr.bf16.mxu0 0
        %825 = vmatpush1.bf16.xpose.msra.mxu0 0
        %826 = vmatprep.subr.bf16.mxu0 0
        %827 = vmatpush1.bf16.xpose.msra.mxu0 0
        %828 = vmatprep.subr.bf16.mxu0 0
        %829 = vmatpush1.bf16.xpose.msra.mxu0 0
        %830 = vmatprep.subr.bf16.mxu0 0
        %831 = vmatpush1.bf16.xpose.msra.mxu0 0
        %832 = vmatprep.subr.bf16.mxu0 0
        %833 = vmatpush1.bf16.xpose.msra.mxu0 0
        %834 = vmatprep.subr.bf16.mxu0 0
        %835 = vmatpush1.bf16.xpose.msra.mxu0 0
        %836 = vmatprep.subr.bf16.mxu0 0
        %837 = vmatpush1.bf16.xpose.msra.mxu0 0
        %838 = vmatprep.mubr.bf16.mxu0 0
        %839 = vmatmul.mubr.bf16.gmra.mrb[0].mxu0 %v801
        %v840 = vpop.f32.mrb[0].mxu0
        %v841 = vadd.f32 0.0, %v840
        %v842 = vpop.f32.mrb[0].mxu0
        %v843 = vpop.f32.mrb[0].mxu0
        %v844 = vpop.f32.mrb[0].mxu0
        %845 = vdwg.mxu0
        %v846 = vmul.f32 %v841, 0.35355338
        %v847 = vadd.f32 %v846, %v726
        %v848 = vsel %vm799, %v847, -inf
        %849 = vmax.xlane.f32.xlu0 %v848
        %v850 = vpop.xlane.xlu0 %849
        %v851 = vsub.f32 %v847, %v850
        %v852 = vmul.f32 %v851, 1.442695
        %v853 = vpow.pop %v852
        %v854 = vsel %vm799, %v853, 0.0
        %855 = vadd.xlane.f32.xlu0 %v854
        %v856 = vpop.xlane.xlu0 %855
        %v857 = vrcp.pop %v856
        %v858 = vmul.f32 %v853, %v857
        %v859 = vpack.c.bf16 %v858, %v858
        %860 = vrot.lane.b32.xlu0 %v795, 64
        %v861 = vpop.permute.xlu0 %860
        %v863 = vsel %vm799, %v859, 0
        %vm865 = vcmask 1043456
        %v867 = vsel %vm865, %v861, 0
        %869 = vmatprep.subr.bf16.mxu0 0
        %870 = vmatpush1.bf16.msra.mxu0 %v867
        %871 = vmatprep.subr.bf16.mxu0 0
        %872 = vmatpush1.bf16.msra.mxu0 0
        %873 = vmatprep.subr.bf16.mxu0 0
        %874 = vmatpush1.bf16.msra.mxu0 0
        %875 = vmatprep.subr.bf16.mxu0 0
        %876 = vmatpush1.bf16.msra.mxu0 0
        %877 = vmatprep.subr.bf16.mxu0 0
        %878 = vmatpush1.bf16.msra.mxu0 0
        %879 = vmatprep.subr.bf16.mxu0 0
        %880 = vmatpush1.bf16.msra.mxu0 0
        %881 = vmatprep.subr.bf16.mxu0 0
        %882 = vmatpush1.bf16.msra.mxu0 0
        %883 = vmatprep.subr.bf16.mxu0 0
        %884 = vmatpush1.bf16.msra.mxu0 0
        %885 = vmatprep.subr.bf16.mxu0 0
        %886 = vmatpush1.bf16.msra.mxu0 0
        %887 = vmatprep.subr.bf16.mxu0 0
        %888 = vmatpush1.bf16.msra.mxu0 0
        %889 = vmatprep.subr.bf16.mxu0 0
        %890 = vmatpush1.bf16.msra.mxu0 0
        %891 = vmatprep.subr.bf16.mxu0 0
        %892 = vmatpush1.bf16.msra.mxu0 0
        %893 = vmatprep.subr.bf16.mxu0 0
        %894 = vmatpush1.bf16.msra.mxu0 0
        %895 = vmatprep.subr.bf16.mxu0 0
        %896 = vmatpush1.bf16.msra.mxu0 0
        %897 = vmatprep.subr.bf16.mxu0 0
        %898 = vmatpush1.bf16.msra.mxu0 0
        %899 = vmatprep.subr.bf16.mxu0 0
        %900 = vmatpush1.bf16.msra.mxu0 0
        %901 = vmatprep.mubr.bf16.mxu0 0
        %902 = vmatmul.mubr.bf16.gmra.mrb[0].mxu0 %v863
        %v903 = vpop.f32.mrb[0].mxu0
        %v904 = vadd.f32 0.0, %v903
        %v905 = vpop.f32.mrb[0].mxu0
        %v906 = vpop.f32.mrb[0].mxu0
        %v907 = vpop.f32.mrb[0].mxu0
        %908 = vdwg.mxu0
        %909 = vst.msk [vmem:[#allocation2] sm:$0xff] %vm799, %v904
        %910 = vrot.lane.b32.xlu0 %v795, 120
        %v911 = vpop.permute.xlu0 %910
        %912 = vrot.lane.b32.xlu0 %v795, 88
        %v913 = vpop.permute.xlu0 %912
        %v915 = vsel %vm799, %v911, 0
        %v918 = vsel %vm799, %v913, 0
        %920 = vmatprep.subr.bf16.mxu0 0
        %921 = vmatpush1.bf16.xpose.msra.mxu0 %v918
        %922 = vmatprep.subr.bf16.mxu0 0
        %923 = vmatpush1.bf16.xpose.msra.mxu0 0
        %924 = vmatprep.subr.bf16.mxu0 0
        %925 = vmatpush1.bf16.xpose.msra.mxu0 0
        %926 = vmatprep.subr.bf16.mxu0 0
        %927 = vmatpush1.bf16.xpose.msra.mxu0 0
        %928 = vmatprep.subr.bf16.mxu0 0
        %929 = vmatpush1.bf16.xpose.msra.mxu0 0
        %930 = vmatprep.subr.bf16.mxu0 0
        %931 = vmatpush1.bf16.xpose.msra.mxu0 0
        %932 = vmatprep.subr.bf16.mxu0 0
        %933 = vmatpush1.bf16.xpose.msra.mxu0 0
        %934 = vmatprep.subr.bf16.mxu0 0
        %935 = vmatpush1.bf16.xpose.msra.mxu0 0
        %936 = vmatprep.subr.bf16.mxu0 0
        %937 = vmatpush1.bf16.xpose.msra.mxu0 0
        %938 = vmatprep.subr.bf16.mxu0 0
        %939 = vmatpush1.bf16.xpose.msra.mxu0 0
        %940 = vmatprep.subr.bf16.mxu0 0
        %941 = vmatpush1.bf16.xpose.msra.mxu0 0
        %942 = vmatprep.subr.bf16.mxu0 0
        %943 = vmatpush1.bf16.xpose.msra.mxu0 0
        %944 = vmatprep.subr.bf16.mxu0 0
        %945 = vmatpush1.bf16.xpose.msra.mxu0 0
        %946 = vmatprep.subr.bf16.mxu0 0
        %947 = vmatpush1.bf16.xpose.msra.mxu0 0
        %948 = vmatprep.subr.bf16.mxu0 0
        %949 = vmatpush1.bf16.xpose.msra.mxu0 0
        %950 = vmatprep.subr.bf16.mxu0 0
        %951 = vmatpush1.bf16.xpose.msra.mxu0 0
        %952 = vmatprep.mubr.bf16.mxu0 0
        %953 = vmatmul.mubr.bf16.gmra.mrb[0].mxu0 %v915
        %v954 = vpop.f32.mrb[0].mxu0
        %v955 = vadd.f32 0.0, %v954
        %v956 = vpop.f32.mrb[0].mxu0
        %v957 = vpop.f32.mrb[0].mxu0
        %v958 = vpop.f32.mrb[0].mxu0
        %959 = vdwg.mxu0
        %v960 = vmul.f32 %v955, 0.35355338
        %v961 = vadd.f32 %v960, %v726
        %v962 = vsel %vm799, %v961, -inf
        %963 = vmax.xlane.f32.xlu0 %v962
        %v964 = vpop.xlane.xlu0 %963
        %v965 = vsub.f32 %v961, %v964
        %v966 = vmul.f32 %v965, 1.442695
        %v967 = vpow.pop %v966
        %v968 = vsel %vm799, %v967, 0.0
        %969 = vadd.xlane.f32.xlu0 %v968
        %v970 = vpop.xlane.xlu0 %969
        %v971 = vrcp.pop %v970
        %v972 = vmul.f32 %v967, %v971
        %v973 = vpack.c.bf16 %v972, %v972
        %974 = vrot.lane.b32.xlu0 %v795, 56
        %v975 = vpop.permute.xlu0 %974
        %v977 = vsel %vm799, %v973, 0
        %v980 = vsel %vm865, %v975, 0
        %982 = vmatprep.subr.bf16.mxu0 0
        %983 = vmatpush1.bf16.msra.mxu0 %v980
        %984 = vmatprep.subr.bf16.mxu0 0
        %985 = vmatpush1.bf16.msra.mxu0 0
        %986 = vmatprep.subr.bf16.mxu0 0
        %987 = vmatpush1.bf16.msra.mxu0 0
        %988 = vmatprep.subr.bf16.mxu0 0
        %989 = vmatpush1.bf16.msra.mxu0 0
        %990 = vmatprep.subr.bf16.mxu0 0
        %991 = vmatpush1.bf16.msra.mxu0 0
        %992 = vmatprep.subr.bf16.mxu0 0
        %993 = vmatpush1.bf16.msra.mxu0 0
        %994 = vmatprep.subr.bf16.mxu0 0
        %995 = vmatpush1.bf16.msra.mxu0 0
        %996 = vmatprep.subr.bf16.mxu0 0
        %997 = vmatpush1.bf16.msra.mxu0 0
        %998 = vmatprep.subr.bf16.mxu0 0
        %999 = vmatpush1.bf16.msra.mxu0 0
        %1000 = vmatprep.subr.bf16.mxu0 0
        %1001 = vmatpush1.bf16.msra.mxu0 0
        %1002 = vmatprep.subr.bf16.mxu0 0
        %1003 = vmatpush1.bf16.msra.mxu0 0
        %1004 = vmatprep.subr.bf16.mxu0 0
        %1005 = vmatpush1.bf16.msra.mxu0 0
        %1006 = vmatprep.subr.bf16.mxu0 0
        %1007 = vmatpush1.bf16.msra.mxu0 0
        %1008 = vmatprep.subr.bf16.mxu0 0
        %1009 = vmatpush1.bf16.msra.mxu0 0
        %1010 = vmatprep.subr.bf16.mxu0 0
        %1011 = vmatpush1.bf16.msra.mxu0 0
        %1012 = vmatprep.subr.bf16.mxu0 0
        %1013 = vmatpush1.bf16.msra.mxu0 0
        %1014 = vmatprep.mubr.bf16.mxu0 0
        %1015 = vmatmul.mubr.bf16.gmra.mrb[0].mxu0 %v977
        %v1016 = vpop.f32.mrb[0].mxu0
        %v1017 = vadd.f32 0.0, %v1016
        %v1018 = vpop.f32.mrb[0].mxu0
        %v1019 = vpop.f32.mrb[0].mxu0
        %v1020 = vpop.f32.mrb[0].mxu0
        %1021 = vdwg.mxu0
        %1023 = vrot.lane.b32.xlu0 %v1017, 8
        %v1024 = vpop.permute.xlu0 %1023
        %vm1026 = vcmask 130112
        %1027 = vst.msk [vmem:[#allocation2] sm:$0xff] %vm1026, %v1024
        %1028 = vrot.lane.b32.xlu0 %v795, 112
        %v1029 = vpop.permute.xlu0 %1028
        %1030 = vrot.lane.b32.xlu0 %v795, 80
        %v1031 = vpop.permute.xlu0 %1030
        %v1033 = vsel %vm799, %v1029, 0
        %v1036 = vsel %vm799, %v1031, 0
        %1038 = vmatprep.subr.bf16.mxu0 0
        %1039 = vmatpush1.bf16.xpose.msra.mxu0 %v1036
        %1040 = vmatprep.subr.bf16.mxu0 0
        %1041 = vmatpush1.bf16.xpose.msra.mxu0 0
        %1042 = vmatprep.subr.bf16.mxu0 0
        %1043 = vmatpush1.bf16.xpose.msra.mxu0 0
        %1044 = vmatprep.subr.bf16.mxu0 0
        %1045 = vmatpush1.bf16.xpose.msra.mxu0 0
        %1046 = vmatprep.subr.bf16.mxu0 0
        %1047 = vmatpush1.bf16.xpose.msra.mxu0 0
        %1048 = vmatprep.subr.bf16.mxu0 0
        %1049 = vmatpush1.bf16.xpose.msra.mxu0 0
        %1050 = vmatprep.subr.bf16.mxu0 0
        %1051 = vmatpush1.bf16.xpose.msra.mxu0 0
        %1052 = vmatprep.subr.bf16.mxu0 0
        %1053 = vmatpush1.bf16.xpose.msra.mxu0 0
        %1054 = vmatprep.subr.bf16.mxu0 0
        %1055 = vmatpush1.bf16.xpose.msra.mxu0 0
        %1056 = vmatprep.subr.bf16.mxu0 0
        %1057 = vmatpush1.bf16.xpose.msra.mxu0 0
        %1058 = vmatprep.subr.bf16.mxu0 0
        %1059 = vmatpush1.bf16.xpose.msra.mxu0 0
        %1060 = vmatprep.subr.bf16.mxu0 0
        %1061 = vmatpush1.bf16.xpose.msra.mxu0 0
        %1062 = vmatprep.subr.bf16.mxu0 0
        %1063 = vmatpush1.bf16.xpose.msra.mxu0 0
        %1064 = vmatprep.subr.bf16.mxu0 0
        %1065 = vmatpush1.bf16.xpose.msra.mxu0 0
        %1066 = vmatprep.subr.bf16.mxu0 0
        %1067 = vmatpush1.bf16.xpose.msra.mxu0 0
        %1068 = vmatprep.subr.bf16.mxu0 0
        %1069 = vmatpush1.bf16.xpose.msra.mxu0 0
        %1070 = vmatprep.mubr.bf16.mxu0 0
        %1071 = vmatmul.mubr.bf16.gmra.mrb[0].mxu0 %v1033
        %v1072 = vpop.f32.mrb[0].mxu0
        %v1073 = vadd.f32 0.0, %v1072
        %v1074 = vpop.f32.mrb[0].mxu0
        %v1075 = vpop.f32.mrb[0].mxu0
        %v1076 = vpop.f32.mrb[0].mxu0
        %1077 = vdwg.mxu0
        %v1078 = vmul.f32 %v1073, 0.35355338
        %v1079 = vadd.f32 %v1078, %v726
        %v1080 = vsel %vm799, %v1079, -inf
        %1081 = vmax.xlane.f32.xlu0 %v1080
        %v1082 = vpop.xlane.xlu0 %1081
        %v1083 = vsub.f32 %v1079, %v1082
        %v1084 = vmul.f32 %v1083, 1.442695
        %v1085 = vpow.pop %v1084
        %v1086 = vsel %vm799, %v1085, 0.0
        %1087 = vadd.xlane.f32.xlu0 %v1086
        %v1088 = vpop.xlane.xlu0 %1087
        %v1089 = vrcp.pop %v1088
        %v1090 = vmul.f32 %v1085, %v1089
        %v1091 = vpack.c.bf16 %v1090, %v1090
        %1092 = vrot.lane.b32.xlu0 %v795, 48
        %v1093 = vpop.permute.xlu0 %1092
        %v1095 = vsel %vm799, %v1091, 0
        %v1098 = vsel %vm865, %v1093, 0
        %1100 = vmatprep.subr.bf16.mxu0 0
        %1101 = vmatpush1.bf16.msra.mxu0 %v1098
        %1102 = vmatprep.subr.bf16.mxu0 0
        %1103 = vmatpush1.bf16.msra.mxu0 0
        %1104 = vmatprep.subr.bf16.mxu0 0
        %1105 = vmatpush1.bf16.msra.mxu0 0
        %1106 = vmatprep.subr.bf16.mxu0 0
        %1107 = vmatpush1.bf16.msra.mxu0 0
        %1108 = vmatprep.subr.bf16.mxu0 0
        %1109 = vmatpush1.bf16.msra.mxu0 0
        %1110 = vmatprep.subr.bf16.mxu0 0
        %1111 = vmatpush1.bf16.msra.mxu0 0
        %1112 = vmatprep.subr.bf16.mxu0 0
        %1113 = vmatpush1.bf16.msra.mxu0 0
        %1114 = vmatprep.subr.bf16.mxu0 0
        %1115 = vmatpush1.bf16.msra.mxu0 0
        %1116 = vmatprep.subr.bf16.mxu0 0
        %1117 = vmatpush1.bf16.msra.mxu0 0
        %1118 = vmatprep.subr.bf16.mxu0 0
        %1119 = vmatpush1.bf16.msra.mxu0 0
        %1120 = vmatprep.subr.bf16.mxu0 0
        %1121 = vmatpush1.bf16.msra.mxu0 0
        %1122 = vmatprep.subr.bf16.mxu0 0
        %1123 = vmatpush1.bf16.msra.mxu0 0
        %1124 = vmatprep.subr.bf16.mxu0 0
        %1125 = vmatpush1.bf16.msra.mxu0 0
        %1126 = vmatprep.subr.bf16.mxu0 0
        %1127 = vmatpush1.bf16.msra.mxu0 0
        %1128 = vmatprep.subr.bf16.mxu0 0
        %1129 = vmatpush1.bf16.msra.mxu0 0
        %1130 = vmatprep.subr.bf16.mxu0 0
        %1131 = vmatpush1.bf16.msra.mxu0 0
        %1132 = vmatprep.mubr.bf16.mxu0 0
        %1133 = vmatmul.mubr.bf16.gmra.mrb[0].mxu0 %v1095
        %v1134 = vpop.f32.mrb[0].mxu0
        %v1135 = vadd.f32 0.0, %v1134
        %v1136 = vpop.f32.mrb[0].mxu0
        %v1137 = vpop.f32.mrb[0].mxu0
        %v1138 = vpop.f32.mrb[0].mxu0
        %1139 = vdwg.mxu0
        %1141 = vrot.lane.b32.xlu0 %v1135, 16
        %v1142 = vpop.permute.xlu0 %1141
        %vm1144 = vcmask 195712
        %1145 = vst.msk [vmem:[#allocation2] sm:$0xff] %vm1144, %v1142
        %1146 = vrot.lane.b32.xlu0 %v795, 104
        %v1147 = vpop.permute.xlu0 %1146
        %1148 = vrot.lane.b32.xlu0 %v795, 72
        %v1149 = vpop.permute.xlu0 %1148
        %v1151 = vsel %vm799, %v1147, 0
        %v1154 = vsel %vm799, %v1149, 0
        %1156 = vmatprep.subr.bf16.mxu0 0
        %1157 = vmatpush1.bf16.xpose.msra.mxu0 %v1154
        %1158 = vmatprep.subr.bf16.mxu0 0
        %1159 = vmatpush1.bf16.xpose.msra.mxu0 0
        %1160 = vmatprep.subr.bf16.mxu0 0
        %1161 = vmatpush1.bf16.xpose.msra.mxu0 0
        %1162 = vmatprep.subr.bf16.mxu0 0
        %1163 = vmatpush1.bf16.xpose.msra.mxu0 0
        %1164 = vmatprep.subr.bf16.mxu0 0
        %1165 = vmatpush1.bf16.xpose.msra.mxu0 0
        %1166 = vmatprep.subr.bf16.mxu0 0
        %1167 = vmatpush1.bf16.xpose.msra.mxu0 0
        %1168 = vmatprep.subr.bf16.mxu0 0
        %1169 = vmatpush1.bf16.xpose.msra.mxu0 0
        %1170 = vmatprep.subr.bf16.mxu0 0
        %1171 = vmatpush1.bf16.xpose.msra.mxu0 0
        %1172 = vmatprep.subr.bf16.mxu0 0
        %1173 = vmatpush1.bf16.xpose.msra.mxu0 0
        %1174 = vmatprep.subr.bf16.mxu0 0
        %1175 = vmatpush1.bf16.xpose.msra.mxu0 0
        %1176 = vmatprep.subr.bf16.mxu0 0
        %1177 = vmatpush1.bf16.xpose.msra.mxu0 0
        %1178 = vmatprep.subr.bf16.mxu0 0
        %1179 = vmatpush1.bf16.xpose.msra.mxu0 0
        %1180 = vmatprep.subr.bf16.mxu0 0
        %1181 = vmatpush1.bf16.xpose.msra.mxu0 0
        %1182 = vmatprep.subr.bf16.mxu0 0
        %1183 = vmatpush1.bf16.xpose.msra.mxu0 0
        %1184 = vmatprep.subr.bf16.mxu0 0
        %1185 = vmatpush1.bf16.xpose.msra.mxu0 0
        %1186 = vmatprep.subr.bf16.mxu0 0
        %1187 = vmatpush1.bf16.xpose.msra.mxu0 0
        %1188 = vmatprep.mubr.bf16.mxu0 0
        %1189 = vmatmul.mubr.bf16.gmra.mrb[0].mxu0 %v1151
        %v1190 = vpop.f32.mrb[0].mxu0
        %v1191 = vadd.f32 0.0, %v1190
        %v1192 = vpop.f32.mrb[0].mxu0
        %v1193 = vpop.f32.mrb[0].mxu0
        %v1194 = vpop.f32.mrb[0].mxu0
        %1195 = vdwg.mxu0
        %v1196 = vmul.f32 %v1191, 0.35355338
        %v1197 = vadd.f32 %v1196, %v726
        %v1198 = vsel %vm799, %v1197, -inf
        %1199 = vmax.xlane.f32.xlu0 %v1198
        %v1200 = vpop.xlane.xlu0 %1199
        %v1201 = vsub.f32 %v1197, %v1200
        %v1202 = vmul.f32 %v1201, 1.442695
        %v1203 = vpow.pop %v1202
        %v1204 = vsel %vm799, %v1203, 0.0
        %1205 = vadd.xlane.f32.xlu0 %v1204
        %v1206 = vpop.xlane.xlu0 %1205
        %v1207 = vrcp.pop %v1206
        %v1208 = vmul.f32 %v1203, %v1207
        %v1209 = vpack.c.bf16 %v1208, %v1208
        %1210 = vrot.lane.b32.xlu0 %v795, 40
        %v1211 = vpop.permute.xlu0 %1210
        %v1213 = vsel %vm799, %v1209, 0
        %v1216 = vsel %vm865, %v1211, 0
        %1218 = vmatprep.subr.bf16.mxu0 0
        %1219 = vmatpush1.bf16.msra.mxu0 %v1216
        %1220 = vmatprep.subr.bf16.mxu0 0
        %1221 = vmatpush1.bf16.msra.mxu0 0
        %1222 = vmatprep.subr.bf16.mxu0 0
        %1223 = vmatpush1.bf16.msra.mxu0 0
        %1224 = vmatprep.subr.bf16.mxu0 0
        %1225 = vmatpush1.bf16.msra.mxu0 0
        %1226 = vmatprep.subr.bf16.mxu0 0
        %1227 = vmatpush1.bf16.msra.mxu0 0
        %1228 = vmatprep.subr.bf16.mxu0 0
        %1229 = vmatpush1.bf16.msra.mxu0 0
        %1230 = vmatprep.subr.bf16.mxu0 0
        %1231 = vmatpush1.bf16.msra.mxu0 0
        %1232 = vmatprep.subr.bf16.mxu0 0
        %1233 = vmatpush1.bf16.msra.mxu0 0
        %1234 = vmatprep.subr.bf16.mxu0 0
        %1235 = vmatpush1.bf16.msra.mxu0 0
        %1236 = vmatprep.subr.bf16.mxu0 0
        %1237 = vmatpush1.bf16.msra.mxu0 0
        %1238 = vmatprep.subr.bf16.mxu0 0
        %1239 = vmatpush1.bf16.msra.mxu0 0
        %1240 = vmatprep.subr.bf16.mxu0 0
        %1241 = vmatpush1.bf16.msra.mxu0 0
        %1242 = vmatprep.subr.bf16.mxu0 0
        %1243 = vmatpush1.bf16.msra.mxu0 0
        %1244 = vmatprep.subr.bf16.mxu0 0
        %1245 = vmatpush1.bf16.msra.mxu0 0
        %1246 = vmatprep.subr.bf16.mxu0 0
        %1247 = vmatpush1.bf16.msra.mxu0 0
        %1248 = vmatprep.subr.bf16.mxu0 0
        %1249 = vmatpush1.bf16.msra.mxu0 0
        %1250 = vmatprep.mubr.bf16.mxu0 0
        %1251 = vmatmul.mubr.bf16.gmra.mrb[0].mxu0 %v1213
        %v1252 = vpop.f32.mrb[0].mxu0
        %v1253 = vadd.f32 0.0, %v1252
        %v1254 = vpop.f32.mrb[0].mxu0
        %v1255 = vpop.f32.mrb[0].mxu0
        %v1256 = vpop.f32.mrb[0].mxu0
        %1257 = vdwg.mxu0
        %1259 = vrot.lane.b32.xlu0 %v1253, 24
        %v1260 = vpop.permute.xlu0 %1259
        %vm1262 = vcmask 261312
        %1263 = vst.msk [vmem:[#allocation2] sm:$0xff] %vm1262, %v1260
        %v1264 = vld [vmem:[#allocation2] sm:$0xff]
        %v1265 = vpack.c.bf16 %v1264, %v1264
        %v1266 = vld [vmem:[%s688] sm:$0xf]
        %v1267 = vld [vmem:[%s688 + $0x4] sm:$0xf]
        %v1268 = vld [vmem:[%s688 + $0x8] sm:$0xf]
        %v1269 = vld [vmem:[%s688 + $0xc] sm:$0xf]
        %v1270 = vld [vmem:[%s691] sm:$0x1]
        %v1272 = vlaneseq
        %v1273 = vshrl.u32 %v1272, 7
        %v1274 = vsub.s32 0, %v1273
        %v1275 = vrot.slane %v1270, %v1274
        %v1281 = vunpack.c.l.b16 %v1266
        %v1282 = vunpack.c.l.b16 %v1267
        %v1283 = vunpack.c.l.b16 %v1268
        %v1284 = vunpack.c.l.b16 %v1269
        %v1285 = vpack.c.b16 %v1282, %v1281
        %v1286 = vpack.c.b16 %v1284, %v1283
        %v1290 = vsel %vm751, %v1265, 0
        %1292 = vmatprep.subr.bf16.mxu0 0
        %1293 = vmatpush1.bf16.msra.mxu0 %v1285
        %1294 = vmatprep.subr.bf16.mxu0 0
        %1295 = vmatpush1.bf16.msra.mxu0 %v1286
        %1296 = vmatprep.subr.bf16.mxu0 0
        %1297 = vmatpush1.bf16.msra.mxu0 0
        %1298 = vmatprep.subr.bf16.mxu0 0
        %1299 = vmatpush1.bf16.msra.mxu0 0
        %1300 = vmatprep.subr.bf16.mxu0 0
        %1301 = vmatpush1.bf16.msra.mxu0 0
        %1302 = vmatprep.subr.bf16.mxu0 0
        %1303 = vmatpush1.bf16.msra.mxu0 0
        %1304 = vmatprep.subr.bf16.mxu0 0
        %1305 = vmatpush1.bf16.msra.mxu0 0
        %1306 = vmatprep.subr.bf16.mxu0 0
        %1307 = vmatpush1.bf16.msra.mxu0 0
        %1308 = vmatprep.subr.bf16.mxu0 0
        %1309 = vmatpush1.bf16.msra.mxu0 0
        %1310 = vmatprep.subr.bf16.mxu0 0
        %1311 = vmatpush1.bf16.msra.mxu0 0
        %1312 = vmatprep.subr.bf16.mxu0 0
        %1313 = vmatpush1.bf16.msra.mxu0 0
        %1314 = vmatprep.subr.bf16.mxu0 0
        %1315 = vmatpush1.bf16.msra.mxu0 0
        %1316 = vmatprep.subr.bf16.mxu0 0
        %1317 = vmatpush1.bf16.msra.mxu0 0
        %1318 = vmatprep.subr.bf16.mxu0 0
        %1319 = vmatpush1.bf16.msra.mxu0 0
        %1320 = vmatprep.subr.bf16.mxu0 0
        %1321 = vmatpush1.bf16.msra.mxu0 0
        %1322 = vmatprep.subr.bf16.mxu0 0
        %1323 = vmatpush1.bf16.msra.mxu0 0
        %1324 = vmatprep.mubr.bf16.mxu0 0
        %1325 = vmatmul.mubr.bf16.gmra.mrb[0].mxu0 %v1290
        %v1326 = vpop.f32.mrb[0].mxu0
        %v1327 = vadd.f32 %v1275, %v1326
        %v1328 = vpop.f32.mrb[0].mxu0
        %v1329 = vpop.f32.mrb[0].mxu0
        %v1330 = vpop.f32.mrb[0].mxu0
        %1331 = vdwg.mxu0
        %v1332 = vadd.f32 %v725, %v1327
        %v1333 = vld [vmem:[%s694] sm:$0x1]
        %v1334 = vld [vmem:[%s697] sm:$0x1]
        %v1335 = vsel %vm751, %v1332, 0.0
        %1336 = vadd.xlane.f32.xlu0 %v1335
        %v1337 = vpop.xlane.xlu0 %1336
        %v1338 = vrcp.pop 32.0
        %v1339 = vmul.f32 %v1337, %v1338
        %v1340 = vsub.f32 %v1332, %v1339
        %v1341 = vmul.f32 %v1340, %v1340
        %v1342 = vsel %vm751, %v1341, 0.0
        %1343 = vadd.xlane.f32.xlu0 %v1342
        %v1344 = vpop.xlane.xlu0 %1343
        %v1345 = vmul.f32 %v1344, %v1338
        %v1346 = vadd.f32 %v1345, 1e-05
        %v1347 = vrsqrt.pop %v1346
        %v1348 = vmul.f32 %v1340, %v1347
        %v1350 = vlaneseq
        %v1351 = vshrl.u32 %v1350, 7
        %v1352 = vsub.s32 0, %v1351
        %v1353 = vrot.slane %v1333, %v1352
        %v1355 = vmul.f32 %v1348, %v1353
        %v1357 = vlaneseq
        %v1358 = vshrl.u32 %v1357, 7
        %v1359 = vsub.s32 0, %v1358
        %v1360 = vrot.slane %v1334, %v1359
        %v1362 = vadd.f32 %v1355, %v1360
        %v1363 = vpack.c.bf16 %v1362, %v1362
        %v1364 = vld [vmem:[%s708] sm:$0xf]
        %v1365 = vld [vmem:[%s708 + $0x4] sm:$0xf]
        %v1366 = vld [vmem:[%s708 + $0x8] sm:$0xf]
        %v1367 = vld [vmem:[%s708 + $0xc] sm:$0xf]
        %v1368 = vld [vmem:[%s586] sm:$0x1]
        %v1370 = vlaneseq
        %v1371 = vshrl.u32 %v1370, 7
        %v1372 = vsub.s32 0, %v1371
        %v1373 = vrot.slane %v1368, %v1372
        %v1379 = vunpack.c.l.b16 %v1364
        %v1380 = vunpack.c.l.b16 %v1365
        %v1381 = vunpack.c.l.b16 %v1366
        %v1382 = vunpack.c.l.b16 %v1367
        %v1383 = vpack.c.b16 %v1380, %v1379
        %v1384 = vpack.c.b16 %v1382, %v1381
        %v1388 = vsel %vm751, %v1363, 0
        %1390 = vmatprep.subr.bf16.mxu0 0
        %1391 = vmatpush1.bf16.msra.mxu0 %v1383
        %1392 = vmatprep.subr.bf16.mxu0 0
        %1393 = vmatpush1.bf16.msra.mxu0 %v1384
        %1394 = vmatprep.subr.bf16.mxu0 0
        %1395 = vmatpush1.bf16.msra.mxu0 0
        %1396 = vmatprep.subr.bf16.mxu0 0
        %1397 = vmatpush1.bf16.msra.mxu0 0
        %1398 = vmatprep.subr.bf16.mxu0 0
        %1399 = vmatpush1.bf16.msra.mxu0 0
        %1400 = vmatprep.subr.bf16.mxu0 0
        %1401 = vmatpush1.bf16.msra.mxu0 0
        %1402 = vmatprep.subr.bf16.mxu0 0
        %1403 = vmatpush1.bf16.msra.mxu0 0
        %1404 = vmatprep.subr.bf16.mxu0 0
        %1405 = vmatpush1.bf16.msra.mxu0 0
        %1406 = vmatprep.subr.bf16.mxu0 0
        %1407 = vmatpush1.bf16.msra.mxu0 0
        %1408 = vmatprep.subr.bf16.mxu0 0
        %1409 = vmatpush1.bf16.msra.mxu0 0
        %1410 = vmatprep.subr.bf16.mxu0 0
        %1411 = vmatpush1.bf16.msra.mxu0 0
        %1412 = vmatprep.subr.bf16.mxu0 0
        %1413 = vmatpush1.bf16.msra.mxu0 0
        %1414 = vmatprep.subr.bf16.mxu0 0
        %1415 = vmatpush1.bf16.msra.mxu0 0
        %1416 = vmatprep.subr.bf16.mxu0 0
        %1417 = vmatpush1.bf16.msra.mxu0 0
        %1418 = vmatprep.subr.bf16.mxu0 0
        %1419 = vmatpush1.bf16.msra.mxu0 0
        %1420 = vmatprep.subr.bf16.mxu0 0
        %1421 = vmatpush1.bf16.msra.mxu0 0
        %1422 = vmatprep.mubr.bf16.mxu0 0
        %1423 = vmatmul.mubr.bf16.gmra.mrb[0].mxu0 %v1388
        %v1424 = vpop.f32.mrb[0].mxu0
        %v1425 = vadd.f32 %v1373, %v1424
        %v1426 = vpop.f32.mrb[0].mxu0
        %v1427 = vpop.f32.mrb[0].mxu0
        %v1428 = vpop.f32.mrb[0].mxu0
        %1429 = vdwg.mxu0
        %v1430 = vmax.f32 %v1425, 0.0
        %v1431 = vpack.c.bf16 %v1430, %v1430
        %v1432 = vld [vmem:[%s713] sm:$0xf]
        %v1433 = vld [vmem:[%s713 + $0x4] sm:$0xf]
        %v1434 = vld [vmem:[%s713 + $0x8] sm:$0xf]
        %v1435 = vld [vmem:[%s713 + $0xc] sm:$0xf]
        %v1436 = vld [vmem:[%s713 + $0x10] sm:$0xf]
        %v1437 = vld [vmem:[%s713 + $0x14] sm:$0xf]
        %v1438 = vld [vmem:[%s713 + $0x18] sm:$0xf]
        %v1439 = vld [vmem:[%s713 + $0x1c] sm:$0xf]
        %v1440 = vld [vmem:[%s716] sm:$0x1]
        %v1442 = vlaneseq
        %v1443 = vshrl.u32 %v1442, 7
        %v1444 = vsub.s32 0, %v1443
        %v1445 = vrot.slane %v1440, %v1444
        %v1455 = vunpack.c.l.b16 %v1432
        %v1456 = vunpack.c.l.b16 %v1433
        %v1457 = vunpack.c.l.b16 %v1434
        %v1458 = vunpack.c.l.b16 %v1435
        %v1459 = vunpack.c.l.b16 %v1436
        %v1460 = vunpack.c.l.b16 %v1437
        %v1461 = vunpack.c.l.b16 %v1438
        %v1462 = vunpack.c.l.b16 %v1439
        %v1463 = vpack.c.b16 %v1456, %v1455
        %v1464 = vpack.c.b16 %v1458, %v1457
        %v1465 = vpack.c.b16 %v1460, %v1459
        %v1466 = vpack.c.b16 %v1462, %v1461
        %vm1471 = vcmask 523264
        %v1473 = vsel %vm1471, %v1431, 0
        %1475 = vmatprep.subr.bf16.mxu0 0
        %1476 = vmatpush1.bf16.msra.mxu0 %v1463
        %1477 = vmatprep.subr.bf16.mxu0 0
        %1478 = vmatpush1.bf16.msra.mxu0 %v1464
        %1479 = vmatprep.subr.bf16.mxu0 0
        %1480 = vmatpush1.bf16.msra.mxu0 %v1465
        %1481 = vmatprep.subr.bf16.mxu0 0
        %1482 = vmatpush1.bf16.msra.mxu0 %v1466
        %1483 = vmatprep.subr.bf16.mxu0 0
        %1484 = vmatpush1.bf16.msra.mxu0 0
        %1485 = vmatprep.subr.bf16.mxu0 0
        %1486 = vmatpush1.bf16.msra.mxu0 0
        %1487 = vmatprep.subr.bf16.mxu0 0
        %1488 = vmatpush1.bf16.msra.mxu0 0
        %1489 = vmatprep.subr.bf16.mxu0 0
        %1490 = vmatpush1.bf16.msra.mxu0 0
        %1491 = vmatprep.subr.bf16.mxu0 0
        %1492 = vmatpush1.bf16.msra.mxu0 0
        %1493 = vmatprep.subr.bf16.mxu0 0
        %1494 = vmatpush1.bf16.msra.mxu0 0
        %1495 = vmatprep.subr.bf16.mxu0 0
        %1496 = vmatpush1.bf16.msra.mxu0 0
        %1497 = vmatprep.subr.bf16.mxu0 0
        %1498 = vmatpush1.bf16.msra.mxu0 0
        %1499 = vmatprep.subr.bf16.mxu0 0
        %1500 = vmatpush1.bf16.msra.mxu0 0
        %1501 = vmatprep.subr.bf16.mxu0 0
        %1502 = vmatpush1.bf16.msra.mxu0 0
        %1503 = vmatprep.subr.bf16.mxu0 0
        %1504 = vmatpush1.bf16.msra.mxu0 0
        %1505 = vmatprep.subr.bf16.mxu0 0
        %1506 = vmatpush1.bf16.msra.mxu0 0
        %1507 = vmatprep.mubr.bf16.mxu0 0
        %1508 = vmatmul.mubr.bf16.gmra.mrb[0].mxu0 %v1473
        %v1509 = vpop.f32.mrb[0].mxu0
        %v1510 = vadd.f32 %v1445, %v1509
        %v1511 = vpop.f32.mrb[0].mxu0
        %v1512 = vpop.f32.mrb[0].mxu0
        %v1513 = vpop.f32.mrb[0].mxu0
        %1514 = vdwg.mxu0
        %v1515 = vadd.f32 %v1362, %v1510
        %v1516 = vld [vmem:[%s700] sm:$0x1]
        %v1517 = vld [vmem:[%s703] sm:$0x1]
        %v1518 = vsel %vm751, %v1515, 0.0
        %1519 = vadd.xlane.f32.xlu0 %v1518
        %v1520 = vpop.xlane.xlu0 %1519
        %v1521 = vmul.f32 %v1520, %v1338
        %v1522 = vsub.f32 %v1515, %v1521
        %v1523 = vmul.f32 %v1522, %v1522
        %v1524 = vsel %vm751, %v1523, 0.0
        %1525 = vadd.xlane.f32.xlu0 %v1524
        %v1526 = vpop.xlane.xlu0 %1525
        %v1527 = vmul.f32 %v1526, %v1338
        %v1528 = vadd.f32 %v1527, 1e-05
        %v1529 = vrsqrt.pop %v1528
        %v1530 = vmul.f32 %v1522, %v1529
        %v1532 = vlaneseq
        %v1533 = vshrl.u32 %v1532, 7
        %v1534 = vsub.s32 0, %v1533
        %v1535 = vrot.slane %v1516, %v1534
        %v1537 = vmul.f32 %v1530, %v1535
        %v1539 = vlaneseq
        %v1540 = vshrl.u32 %v1539, 7
        %v1541 = vsub.s32 0, %v1540
        %v1542 = vrot.slane %v1517, %v1541
        %v1544 = vadd.f32 %v1537, %v1542
        %1545 = vst.msk [vmem:[%s675] sm:$0xff] %vm751, %v1544
        %s1546 = sand.u32 %s411, 1
        %s1547 = scalar_lea.sflag [#allocation5], %s1546
        %s1548 = sand.u32 %s411, 1
        %s1549 = smul.addr %s1548, 8
        %s1550 = scalar_lea.vmem [#allocation9], %s1549
        // Predicated region
        $region93: #{tpu_custom_call.1} parent=75 // pred_check
          %p1551 = pneg %p421
        $region94: #{tpu_custom_call.1} parent=75 // pred_check_branch
          %1553 = sbr.rel (%p1551) target = $region96
        $region95: #{tpu_custom_call.1} parent=75 // pred_region
          %s1555 = ssub.s32 128, 128
          %1556 = vsyncadd %s1547, %s1555
          %s1557 = smul.addr %s36, 128
          %s1558 = scalar_lea.hbm %s14, %s1557
          %s1560 = sshll.u32 %s1550, 4
          %s1561 = int_to_ptr.vmem [resolvable:$true] %s1560
          %1563 = dma.vmem_to_hbm [thread:$0]  %s1561, 128, %s1558, %s1547
        $region96: #{tpu_custom_call.1} parent=75 // pred_fallthru
          _
      $region76: #{tpu_custom_call.1} parent=5 // pred_fallthru
        _
      %p1564 = scmp.le.s32.totalorder 2, %s27
      // Predicated region
      $region97: #{tpu_custom_call.1} parent=5 // pred_check
        %p1565 = pneg %p1564
      $region98: #{tpu_custom_call.1} parent=5 // pred_check_branch
        %1567 = sbr.rel (%p1565) target = $region100
      $region99: #{tpu_custom_call.1} parent=5 // pred_region
        %s1568 = ssub.s32 %s27, 2
        // Predicated region
        $region101: #{tpu_custom_call.1} parent=99 // pred_check
          %p1569 = pneg %p427
        $region102: #{tpu_custom_call.1} parent=99 // pred_check_branch
          %1571 = sbr.rel (%p1569) target = $region104
        $region103: #{tpu_custom_call.1} parent=99 // pred_region
          %s1572 = sand.u32 %s412, 1
          %s1573 = scalar_lea.sflag [#allocation5], %s1572
          %s1574 = sand.u32 %s412, 1
          %s1575 = smul.addr %s1574, 8
          %s1576 = scalar_lea.vmem [#allocation9], %s1575
          %1577 = dma.done %s1573, 128
        $region104: #{tpu_custom_call.1} parent=99 // pred_fallthru
          _
      $region100: #{tpu_custom_call.1} parent=5 // pred_fallthru
        _
    $region6: #{tpu_custom_call.1} parent=1 // loop_footer
      %s31 = sadd.s32 1, %s27
    $region7: #{tpu_custom_call.1} parent=1 // loop_footer_branch
      %26 = sbr.rel target = $region3
    $region8: #{tpu_custom_call.1} parent=1 // loop_exit
      _
    %1578 = vsyncpa [#allocation4], 1
    %s1579 = scalar_lea.sflag [#allocation4], 1
    %1580 = vsyncpa %s1579, 1
    %1581 = vsyncpa [#allocation7], 1
    %1582 = vsyncpa [#allocation5], 1
    %s1583 = scalar_lea.sflag [#allocation5], 1
    %1584 = vsyncpa %s1583, 1

</llo_original>
